<compile_context>
chip_gen: v5e
topology: v5e:2x2
jax: 0.10.0
libtpu: 0.0.40
codegen_flags: <defaults>
</compile_context>

<pallas_src>
import math
from functools import partial

import jax
import jax.numpy as jnp
from jax import lax
from jax.experimental import pallas as pl
from jax.experimental.pallas import tpu as pltpu

_LN_EPS = 1e-5  # torch.nn.LayerNorm default


# ----------------------------------------------------------------------------
# Kernel: one EncoderLayer applied to one (batch_block * N)-row slab.
# grid = (batch_blocks, depth); depth is the trailing "arbitrary" axis and the
# activation is carried across it in a VMEM scratch.
# ----------------------------------------------------------------------------
def _encoder_stack_kernel(x_ref, wqvk_ref, bqvk_ref, ln1_g_ref, ln1_b_ref,
                          w1_ref, b1_ref, w2_ref, b2_ref, ln2_g_ref, ln2_b_ref,
                          out_ref, act_ref, attn_ref,
                          *, batch_block, seq_len, head_num, attn_type):
    """Refs (R = batch_block * seq_len):

    x_ref   (R, D)  f32        w1_ref  (D, H)  mxu dtype   out_ref (R, D)
    wqvk    (D, 3D) mxu dtype  b1_ref  (1, H)  f32         act_ref (R, D) f32
    bqvk    (1, 3D) f32        w2_ref  (H, D)  mxu dtype   attn_ref(R, D) f32
    ln*_g/b (1, D)  f32        b2_ref  (1, D)  f32
    """
    layer = pl.program_id(1)

    @pl.when(layer == 0)
    def _():                                     # first layer: load input once
        act_ref[...] = x_ref[...].astype(jnp.float32)

    x = act_ref[...]                             # (R, D) f32 residual stream
    R, D = x.shape
    d_head = D // head_num
    mxu_dtype = wqvk_ref.dtype

    # ---- to_qvk projection: one MXU matmul over all rows, f32 accumulation --
    qvk = jnp.dot(x.astype(mxu_dtype), wqvk_ref[...],
                  preferred_element_type=jnp.float32) + bqvk_ref[...]
    # PyTorch unpacks `q, v, k = to_eachhead(to_qvk(x))`: chunk0=q, 1=v, 2=k.
    q_all = qvk[:, 0 * D:1 * D]
    v_all = qvk[:, 1 * D:2 * D]
    k_all = qvk[:, 2 * D:3 * D]

    inv_sqrt_d = 1.0 / math.sqrt(d_head)
    dn_qkT = (((2,), (2,)), ((0,), (0,)))        # (b,n,d) x (b,m,d) -> (b,n,m)
    dn_av = (((2,), (1,)), ((0,), (0,)))         # (b,n,m) x (b,m,e) -> (b,n,e)
    dn_kv = (((1,), (1,)), ((0,), (0,)))         # (b,n,d) x (b,n,e) -> (b,d,e)

    for h in range(head_num):                    # static unroll, small head_num
        lo, hi = h * d_head, (h + 1) * d_head
        qh = q_all[:, lo:hi].reshape(batch_block, seq_len, d_head)
        kh = k_all[:, lo:hi].reshape(batch_block, seq_len, d_head)
        vh = v_all[:, lo:hi].reshape(batch_block, seq_len, d_head)

        if attn_type == "full":
            # 1/sqrt(d_head) is already folded into W_q / b_q on the host.
            s = lax.dot_general(qh.astype(mxu_dtype), kh.astype(mxu_dtype),
                                dn_qkT, preferred_element_type=jnp.float32)
            s = s - jnp.max(s, axis=-1, keepdims=True)
            p = jnp.exp(s)
            atn = p / jnp.sum(p, axis=-1, keepdims=True)     # exact normalise
            o = lax.dot_general(atn.astype(mxu_dtype), vh.astype(mxu_dtype),
                                dn_av, preferred_element_type=jnp.float32)
        elif attn_type == "linear":
            # q.softmax(-1) * d^-0.5 ; k.softmax(-2) ; ctx = k^T v ; o = q ctx
            pq = jnp.exp(qh - jnp.max(qh, axis=-1, keepdims=True))
            qs = pq / jnp.sum(pq, axis=-1, keepdims=True) * inv_sqrt_d
            pk = jnp.exp(kh - jnp.max(kh, axis=1, keepdims=True))
            ks = pk / jnp.sum(pk, axis=1, keepdims=True)
            ctx = lax.dot_general(ks.astype(mxu_dtype), vh.astype(mxu_dtype),
                                  dn_kv, preferred_element_type=jnp.float32)
            o = lax.dot_general(qs.astype(mxu_dtype), ctx.astype(mxu_dtype),
                                dn_av, preferred_element_type=jnp.float32)
        else:
            # TODO(synk): attn_type='linear_attn_elu' not implemented.
            raise NotImplementedError(attn_type)

        # concat_head: head h occupies lanes [h*d_head, (h+1)*d_head).
        attn_ref[:, lo:hi] = o.reshape(R, d_head)

    # ---- residual + LayerNorm 1 (f32) ---------------------------------------
    h1 = attn_ref[...] + x
    mu1 = jnp.mean(h1, axis=-1, keepdims=True)
    var1 = jnp.mean(jnp.square(h1 - mu1), axis=-1, keepdims=True)
    h1 = (h1 - mu1) * lax.rsqrt(var1 + _LN_EPS)
    h1 = h1 * ln1_g_ref[...] + ln1_b_ref[...]

    # ---- FeedForward: Linear -> ReLU -> Linear ------------------------------
    f = jnp.dot(h1.astype(mxu_dtype), w1_ref[...],
                preferred_element_type=jnp.float32) + b1_ref[...]
    f = jnp.maximum(f, 0.0)
    f = jnp.dot(f.astype(mxu_dtype), w2_ref[...],
                preferred_element_type=jnp.float32) + b2_ref[...]

    # ---- residual + LayerNorm 2 (f32) ---------------------------------------
    h2 = f + h1
    mu2 = jnp.mean(h2, axis=-1, keepdims=True)
    var2 = jnp.mean(jnp.square(h2 - mu2), axis=-1, keepdims=True)
    h2 = (h2 - mu2) * lax.rsqrt(var2 + _LN_EPS)
    h2 = h2 * ln2_g_ref[...] + ln2_b_ref[...]

    act_ref[...] = h2                            # carry to next layer (depth)

    @pl.when(layer == pl.num_programs(1) - 1)
    def _():                                     # single flattened slab store
        out_ref[...] = h2.astype(out_ref.dtype)


# ----------------------------------------------------------------------------
# Host-side parameter packing
# ----------------------------------------------------------------------------
def stack_layer_params(layer_params, *, dim, head_num, attn_type,
                       weights_dtype=jnp.bfloat16):
    """Stack per-layer params along a leading depth axis.

    Big matmul weights (wqvk, w1, w2) are cast to `weights_dtype` (bf16 by
    default: half the DMA bytes + native MXU path); biases / LayerNorm params
    stay f32.  For full attention, 1/sqrt(d_head) is folded into W_q / b_q so
    the (N, N) score matrix is never rescaled in-kernel.
    """
    stk = lambda name: jnp.stack([p[name] for p in layer_params], axis=0)
    depth = len(layer_params)

    wqvk = stk("wqvk")                              # (L, D, 3D)
    bqvk = stk("bqvk")[:, None, :]                  # (L, 1, 3D)
    if attn_type == "full":
        scale = 1.0 / math.sqrt(dim // head_num)
        wqvk = wqvk.at[:, :, :dim].multiply(scale)
        bqvk = bqvk.at[:, :, :dim].multiply(scale)

    return dict(
        attn_type=attn_type,
        wqvk=wqvk.astype(weights_dtype),
        bqvk=bqvk.astype(jnp.float32),
        ln1_g=stk("ln1_g")[:, None, :].astype(jnp.float32),
        ln1_b=stk("ln1_b")[:, None, :].astype(jnp.float32),
        w1=stk("w1").astype(weights_dtype),
        b1=stk("b1")[:, None, :].astype(jnp.float32),
        w2=stk("w2").astype(weights_dtype),
        b2=stk("b2")[:, None, :].astype(jnp.float32),
        ln2_g=stk("ln2_g")[:, None, :].astype(jnp.float32),
        ln2_b=stk("ln2_b")[:, None, :].astype(jnp.float32),
    )


def _pick_batch_block(B, N, *, target_rows=256, min_parallel=2):
    """Largest divisor of B with block rows <= target_rows, keeping at least
    `min_parallel` grid steps (v7x: 2 TensorCores/chip) when B allows."""
    best = 1
    for d in range(1, B + 1):
        if B % d:
            continue
        if B >= min_parallel and B // d < min_parallel:
            continue
        if d * N <= target_rows:
            best = d
    return best


# ----------------------------------------------------------------------------
# Wrapper: whole Encoder = one pallas_call
# ----------------------------------------------------------------------------
def encoder_forward(x, stacked, *, head_num, attn_type="linear",
                    batch_block=None):
    """Encoder.forward.  x: (B, N, D) f32; stacked: output of
    stack_layer_params (depth-stacked weights)."""
    assert attn_type in ("full", "linear")  # TODO(synk): 'linear_attn_elu'
    assert stacked["attn_type"] == attn_type, "params packed for other attn"

    B, N, D = x.shape
    depth = stacked["wqvk"].shape[0]
    H = stacked["w1"].shape[-1]
    assert D % head_num == 0
    d_head = D // head_num

    if batch_block is None:
        batch_block = _pick_batch_block(B, N)
    assert B % batch_block == 0
    R = batch_block * N                       # rows per grid step
    n_bblocks = B // batch_block

    x_flat = x.reshape(B * N, D)              # lane-layout-friendly row slab

    kernel = partial(_encoder_stack_kernel, batch_block=batch_block,
                     seq_len=N, head_num=head_num, attn_type=attn_type)

    io_spec = pl.BlockSpec((R, D), lambda b, l: (b, 0))
    wspec = lambda s: pl.BlockSpec((pl.Squeezed(),) + s,
                                   lambda b, l: (l, 0, 0))

    # ---- advisory cost estimate for the XLA scheduler -----------------------
    proj_flops = 2 * B * N * D * 3 * D
    ff_flops = 4 * B * N * D * H
    if attn_type == "full":
        attn_flops = 4 * B * head_num * N * N * d_head
        trans = B * head_num * N * N
    else:
        attn_flops = 4 * B * head_num * N * d_head * d_head
        trans = 2 * B * N * D
    wdt = stacked["wqvk"].dtype.itemsize
    weight_bytes = n_bblocks * depth * (
        wdt * (3 * D * D + D * H + H * D) + 4 * (3 * D + 2 * D + H + 4 * D))
    cost = pl.CostEstimate(
        flops=int(depth * (proj_flops + attn_flops + ff_flops)),
        transcendentals=int(depth * trans),
        bytes_accessed=int(4 * 2 * B * N * D + weight_bytes))

    # ---- VMEM budget: blocks + scratch + temporaries, clamped [16, 32] MiB --
    blk_bytes = (2 * 4 * R * D                               # x + out blocks
                 + wdt * (3 * D * D + D * H + H * D)         # matmul weights
                 + 4 * (3 * D + 2 * D + H + 4 * D)           # biases + LN
                 + 2 * 4 * R * D                             # act/attn scratch
                 + 4 * (3 * R * D + R * H + batch_block * N * N))
    vmem_limit = int(min(32 << 20, max(16 << 20, 6 * blk_bytes)))

    out_flat = pl.pallas_call(
        kernel,
        out_shape=jax.ShapeDtypeStruct((B * N, D), x.dtype),
        grid_spec=pltpu.PrefetchScalarGridSpec(
            num_scalar_prefetch=0,
            grid=(n_bblocks, depth),          # depth trailing, activation-carry
            in_specs=[
                io_spec,                      # x (flattened rows)
                wspec((D, 3 * D)),            # to_qvk weight   (in, out)
                wspec((1, 3 * D)),            # to_qvk bias
                wspec((1, D)),                # ln1 gamma
                wspec((1, D)),                # ln1 beta
                wspec((D, H)),                # ff linear1 weight
                wspec((1, H)),                # ff linear1 bias
                wspec((H, D)),                # ff linear2 weight
                wspec((1, D)),                # ff linear2 bias
                wspec((1, D)),                # ln2 gamma
                wspec((1, D)),                # ln2 beta
            ],
            out_specs=io_spec,
            scratch_shapes=[pltpu.VMEM((R, D), jnp.float32),   # activation carry
                            pltpu.VMEM((R, D), jnp.float32)],  # head-concat slab
        ),
        compiler_params=pltpu.CompilerParams(
            dimension_semantics=("parallel", "arbitrary"),
            vmem_limit_bytes=vmem_limit),
        cost_estimate=cost,
    )(x_flat, stacked["wqvk"], stacked["bqvk"], stacked["ln1_g"],
      stacked["ln1_b"], stacked["w1"], stacked["b1"], stacked["w2"],
      stacked["b2"], stacked["ln2_g"], stacked["ln2_b"])

    return out_flat.reshape(B, N, D)


# ----------------------------------------------------------------------------
# Plain-JAX reference mirroring the PyTorch Encoder.forward
# ----------------------------------------------------------------------------
def _layer_norm_ref(x, g, b):
    mu = jnp.mean(x, axis=-1, keepdims=True)
    var = jnp.mean(jnp.square(x - mu), axis=-1, keepdims=True)
    return (x - mu) / jnp.sqrt(var + _LN_EPS) * g + b


def _reference_encoder(x, layer_params, *, head_num, attn_type):
    B, N, D = x.shape
    d = D // head_num
    for p in layer_params:
        qvk = x @ p["wqvk"] + p["bqvk"]
        q_c, v_c, k_c = jnp.split(qvk, 3, axis=-1)   # chunk order: q, v, k
        heads = lambda t: t.reshape(B, N, head_num, d).transpose(0, 2, 1, 3)
        q, v, k = heads(q_c), heads(v_c), heads(k_c)
        if attn_type == "full":
            s = jnp.einsum('bhqd,bhkd->bhqk', q, k) / math.sqrt(d)
            a = jax.nn.softmax(s, axis=-1)
            o = jnp.einsum('bhqk,bhkd->bhqd', a, v)
        elif attn_type == "linear":
            qs = jax.nn.softmax(q, axis=-1) * d ** -0.5
            ks = jax.nn.softmax(k, axis=-2)
            ctx = jnp.einsum('bhnd,bhne->bhde', ks, v)
            o = jnp.einsum('bhnd,bhde->bhne', qs, ctx)
        else:
            raise NotImplementedError(attn_type)
        o = o.transpose(0, 2, 1, 3).reshape(B, N, D)
        h = _layer_norm_ref(o + x, p["ln1_g"], p["ln1_b"])
        f = jnp.maximum(h @ p["w1"] + p["b1"], 0.0) @ p["w2"] + p["b2"]
        x = _layer_norm_ref(f + h, p["ln2_g"], p["ln2_b"])
    return x


# ----------------------------------------------------------------------------
# Demo / self-check
# ----------------------------------------------------------------------------
def _init_layer_params(key, dim, ff_hidnum):
    ks = jax.random.split(key, 10)

    def lin(k, fan_in, shape):
        bound = 1.0 / math.sqrt(fan_in)
        return jax.random.uniform(k, shape, jnp.float32, -bound, bound)

    return dict(
        wqvk=lin(ks[0], dim, (dim, 3 * dim)),
        bqvk=lin(ks[1], dim, (3 * dim,)),
        ln1_g=1.0 + 0.1 * jax.random.normal(ks[2], (dim,), jnp.float32),
        ln1_b=0.1 * jax.random.normal(ks[3], (dim,), jnp.float32),
        w1=lin(ks[4], dim, (dim, ff_hidnum)),
        b1=lin(ks[5], dim, (ff_hidnum,)),
        w2=lin(ks[6], ff_hidnum, (ff_hidnum, dim)),
        b2=lin(ks[7], ff_hidnum, (dim,)),
        ln2_g=1.0 + 0.1 * jax.random.normal(ks[8], (dim,), jnp.float32),
        ln2_b=0.1 * jax.random.normal(ks[9], (dim,), jnp.float32),
    )


if __name__ == "__main__":
    depth, dim, head_num, ff_hidnum = 2, 32, 4, 64
    B, N = 2, 8

    key = jax.random.PRNGKey(0)
    kx, *layer_keys = jax.random.split(key, depth + 1)
    x = jax.random.normal(kx, (B, N, dim), dtype=jnp.float32)
    params = [_init_layer_params(k, dim, ff_hidnum) for k in layer_keys]

    # 1) attn_type='linear' (the module's default), f32 weights.
    st_lin = stack_layer_params(params, dim=dim, head_num=head_num,
                                attn_type="linear", weights_dtype=jnp.float32)
    out_lin = jax.block_until_ready(
        encoder_forward(x, st_lin, head_num=head_num, attn_type="linear"))
    ref_lin = _reference_encoder(x, params, head_num=head_num,
                                 attn_type="linear")
    assert out_lin.shape == (B, N, dim)
    assert jnp.allclose(out_lin, ref_lin, atol=5e-2, rtol=5e-2), \
        "linear attention mismatch vs reference"

    # 2) attn_type='full' (vanilla softmax attention), f32 weights.
    st_full = stack_layer_params(params, dim=dim, head_num=head_num,
                                 attn_type="full", weights_dtype=jnp.float32)
    out_full = jax.block_until_ready(
        encoder_forward(x, st_full, head_num=head_num, attn_type="full"))
    ref_full = _reference_encoder(x, params, head_num=head_num,
                                  attn_type="full")
    assert jnp.allclose(out_full, ref_full, atol=5e-2, rtol=5e-2), \
        "full attention mismatch vs reference"

    # 3) bf16 weights (default; recommended on v6e / v7x), f32 accumulation.
    st_full_bf16 = stack_layer_params(params, dim=dim, head_num=head_num,
                                      attn_type="full")   # bf16 default
    out_bf16 = jax.block_until_ready(
        encoder_forward(x, st_full_bf16, head_num=head_num, attn_type="full"))
    assert bool(jnp.all(jnp.isfinite(out_bf16)))
    assert jnp.allclose(out_bf16, ref_full, atol=1.5e-1, rtol=1.5e-1), \
        "bf16-weight variant drifted too far from the f32 reference"

    print("KERNEL_OK")
</pallas_src>

<mosaic_0001>
module attributes {stable_mosaic.version = 11 : i64} {
  func.func @_encoder_stack_kernel(%arg0: i32, %arg1: i32, %arg2: memref<8x32xf32, #tpu.memory_space<vmem>>, %arg3: memref<1x32x96xf32, #tpu.memory_space<vmem>>, %arg4: memref<1x1x96xf32, #tpu.memory_space<vmem>>, %arg5: memref<1x1x32xf32, #tpu.memory_space<vmem>>, %arg6: memref<1x1x32xf32, #tpu.memory_space<vmem>>, %arg7: memref<1x32x64xf32, #tpu.memory_space<vmem>>, %arg8: memref<1x1x64xf32, #tpu.memory_space<vmem>>, %arg9: memref<1x64x32xf32, #tpu.memory_space<vmem>>, %arg10: memref<1x1x32xf32, #tpu.memory_space<vmem>>, %arg11: memref<1x1x32xf32, #tpu.memory_space<vmem>>, %arg12: memref<1x1x32xf32, #tpu.memory_space<vmem>>, %arg13: memref<8x32xf32, #tpu.memory_space<vmem>>, %arg14: memref<8x32xf32, #tpu.memory_space<vmem>>, %arg15: memref<8x32xf32, #tpu.memory_space<vmem>>) attributes {dimension_semantics = [#tpu.dimension_semantics<parallel>, #tpu.dimension_semantics<arbitrary>], iteration_bounds = array<i64: 2, 2>, scalar_prefetch = 0 : i64, scratch_operands = 2 : i64, tpu.core_type = #tpu.core_type<tc>, window_params = [{transform_indices = @transform_0, window_bounds = array<i64: 8, 32>}, {transform_indices = @transform_1, window_bounds = array<i64: 1, 32, 96>}, {transform_indices = @transform_2, window_bounds = array<i64: 1, 1, 96>}, {transform_indices = @transform_3, window_bounds = array<i64: 1, 1, 32>}, {transform_indices = @transform_4, window_bounds = array<i64: 1, 1, 32>}, {transform_indices = @transform_5, window_bounds = array<i64: 1, 32, 64>}, {transform_indices = @transform_6, window_bounds = array<i64: 1, 1, 64>}, {transform_indices = @transform_7, window_bounds = array<i64: 1, 64, 32>}, {transform_indices = @transform_8, window_bounds = array<i64: 1, 1, 32>}, {transform_indices = @transform_9, window_bounds = array<i64: 1, 1, 32>}, {transform_indices = @transform_10, window_bounds = array<i64: 1, 1, 32>}, {transform_indices = @transform_11, window_bounds = array<i64: 8, 32>}]} {
    %c0_i32 = arith.constant 0 : i32
    %0 = arith.cmpi eq, %arg1, %c0_i32 : i32
    %1 = arith.extui %0 : i1 to i32
    %c0_i32_0 = arith.constant 0 : i32
    %2 = arith.cmpi ne, %1, %c0_i32_0 : i32
    scf.if %2 {
      %c0_83 = arith.constant 0 : index
      %c0_84 = arith.constant 0 : index
      %209 = vector.load %arg2[%c0_83, %c0_84] : memref<8x32xf32, #tpu.memory_space<vmem>>, vector<8x32xf32>
      %c0_85 = arith.constant 0 : index
      %c0_86 = arith.constant 0 : index
      %210 = vector.load %arg14[%c0_85, %c0_86] : memref<8x32xf32, #tpu.memory_space<vmem>>, vector<8x32xf32>
      tpu.vector_store %arg14[%c0_85, %c0_86], %209 {strides = array<i32>} : memref<8x32xf32, #tpu.memory_space<vmem>>, vector<8x32xf32>,
    } else {
    }
    %c0 = arith.constant 0 : index
    %c0_1 = arith.constant 0 : index
    %3 = vector.load %arg14[%c0, %c0_1] : memref<8x32xf32, #tpu.memory_space<vmem>>, vector<8x32xf32>
    %c0_2 = arith.constant 0 : index
    %c0_3 = arith.constant 0 : index
    %c0_4 = arith.constant 0 : index
    %4 = vector.load %arg3[%c0_2, %c0_3, %c0_4] : memref<1x32x96xf32, #tpu.memory_space<vmem>>, vector<1x32x96xf32>
    %5 = vector.shape_cast %4 : vector<1x32x96xf32> to vector<32x96xf32>
    %cst = arith.constant dense<0.000000e+00> : vector<8x96xf32>
    %6 = tpu.matmul %3, %5, %cst {dimension_numbers = #tpu.dot_dimension_numbers<[1], [0], [0], [1], [0, 0, 1, 1], [], []>} : vector<8x32xf32>, vector<32x96xf32>, vector<8x96xf32> -> vector<8x96xf32>
    %c0_5 = arith.constant 0 : index
    %c0_6 = arith.constant 0 : index
    %c0_7 = arith.constant 0 : index
    %7 = vector.load %arg4[%c0_5, %c0_6, %c0_7] : memref<1x1x96xf32, #tpu.memory_space<vmem>>, vector<1x1x96xf32>
    %8 = vector.shape_cast %7 : vector<1x1x96xf32> to vector<1x96xf32>
    %9 = vector.broadcast %8 : vector<1x96xf32> to vector<8x96xf32>
    %10 = arith.addf %6, %9 : vector<8x96xf32>
    %11 = vector.extract_strided_slice %10 {offsets = [0, 0], sizes = [8, 32], strides = [1, 1]} : vector<8x96xf32> to vector<8x32xf32>
    %12 = vector.extract_strided_slice %10 {offsets = [0, 32], sizes = [8, 32], strides = [1, 1]} : vector<8x96xf32> to vector<8x32xf32>
    %13 = vector.extract_strided_slice %10 {offsets = [0, 64], sizes = [8, 32], strides = [1, 1]} : vector<8x96xf32> to vector<8x32xf32>
    %14 = vector.extract_strided_slice %11 {offsets = [0, 0], sizes = [8, 8], strides = [1, 1]} : vector<8x32xf32> to vector<8x8xf32>
    %15 = vector.shape_cast %14 : vector<8x8xf32> to vector<1x8x8xf32>
    %16 = vector.extract_strided_slice %13 {offsets = [0, 0], sizes = [8, 8], strides = [1, 1]} : vector<8x32xf32> to vector<8x8xf32>
    %17 = vector.shape_cast %16 : vector<8x8xf32> to vector<1x8x8xf32>
    %18 = vector.extract_strided_slice %12 {offsets = [0, 0], sizes = [8, 8], strides = [1, 1]} : vector<8x32xf32> to vector<8x8xf32>
    %19 = vector.shape_cast %18 : vector<8x8xf32> to vector<1x8x8xf32>
    %cst_8 = arith.constant dense<0xFF800000> : vector<1x8xf32>
    %20 = vector.multi_reduction <maximumf>, %15, %cst_8 [2] : vector<1x8x8xf32> to vector<1x8xf32>
    %21 = vector.shape_cast %20 : vector<1x8xf32> to vector<1x8x1xf32>
    %22 = vector.broadcast %21 : vector<1x8x1xf32> to vector<1x8x8xf32>
    %23 = arith.subf %15, %22 : vector<1x8x8xf32>
    %24 = math.exp %23 : vector<1x8x8xf32>
    %cst_9 = arith.constant dense<0.000000e+00> : vector<1x8xf32>
    %25 = vector.multi_reduction <add>, %24, %cst_9 [2] : vector<1x8x8xf32> to vector<1x8xf32>
    %26 = vector.shape_cast %25 : vector<1x8xf32> to vector<1x8x1xf32>
    %27 = vector.broadcast %26 : vector<1x8x1xf32> to vector<1x8x8xf32>
    %28 = arith.divf %24, %27 : vector<1x8x8xf32>
    %cst_10 = arith.constant 0.353553385 : f32
    %29 = vector.broadcast %cst_10 : f32 to vector<1x8x8xf32>
    %30 = arith.mulf %28, %29 : vector<1x8x8xf32>
    %cst_11 = arith.constant dense<0xFF800000> : vector<1x8xf32>
    %31 = vector.multi_reduction <maximumf>, %17, %cst_11 [1] : vector<1x8x8xf32> to vector<1x8xf32>
    %32 = vector.shape_cast %31 : vector<1x8xf32> to vector<1x1x8xf32>
    %33 = vector.broadcast %32 : vector<1x1x8xf32> to vector<1x8x8xf32>
    %34 = arith.subf %17, %33 : vector<1x8x8xf32>
    %35 = math.exp %34 : vector<1x8x8xf32>
    %cst_12 = arith.constant dense<0.000000e+00> : vector<1x8xf32>
    %36 = vector.multi_reduction <add>, %35, %cst_12 [1] : vector<1x8x8xf32> to vector<1x8xf32>
    %37 = vector.shape_cast %36 : vector<1x8xf32> to vector<1x1x8xf32>
    %38 = vector.broadcast %37 : vector<1x1x8xf32> to vector<1x8x8xf32>
    %39 = arith.divf %35, %38 : vector<1x8x8xf32>
    %cst_13 = arith.constant dense<0.000000e+00> : vector<1x8x8xf32>
    %40 = tpu.matmul %39, %19, %cst_13 {dimension_numbers = #tpu.dot_dimension_numbers<[1], [1], [2], [2], [0, 0, 0, 2, 1, 2], [0], [0]>} : vector<1x8x8xf32>, vector<1x8x8xf32>, vector<1x8x8xf32> -> vector<1x8x8xf32>
    %cst_14 = arith.constant dense<0.000000e+00> : vector<1x8x8xf32>
    %41 = tpu.matmul %30, %40, %cst_14 {dimension_numbers = #tpu.dot_dimension_numbers<[2], [1], [1], [2], [0, 0, 0, 1, 1, 2], [0], [0]>} : vector<1x8x8xf32>, vector<1x8x8xf32>, vector<1x8x8xf32> -> vector<1x8x8xf32>
    %42 = vector.shape_cast %41 : vector<1x8x8xf32> to vector<8x8xf32>
    %c0_15 = arith.constant 0 : index
    %c0_16 = arith.constant 0 : index
    %43 = vector.load %arg15[%c0_15, %c0_16] : memref<8x32xf32, #tpu.memory_space<vmem>>, vector<8x8xf32>
    tpu.vector_store %arg15[%c0_15, %c0_16], %42 {strides = array<i32>} : memref<8x32xf32, #tpu.memory_space<vmem>>, vector<8x8xf32>,
    %44 = vector.extract_strided_slice %11 {offsets = [0, 8], sizes = [8, 8], strides = [1, 1]} : vector<8x32xf32> to vector<8x8xf32>
    %45 = vector.shape_cast %44 : vector<8x8xf32> to vector<1x8x8xf32>
    %46 = vector.extract_strided_slice %13 {offsets = [0, 8], sizes = [8, 8], strides = [1, 1]} : vector<8x32xf32> to vector<8x8xf32>
    %47 = vector.shape_cast %46 : vector<8x8xf32> to vector<1x8x8xf32>
    %48 = vector.extract_strided_slice %12 {offsets = [0, 8], sizes = [8, 8], strides = [1, 1]} : vector<8x32xf32> to vector<8x8xf32>
    %49 = vector.shape_cast %48 : vector<8x8xf32> to vector<1x8x8xf32>
    %cst_17 = arith.constant dense<0xFF800000> : vector<1x8xf32>
    %50 = vector.multi_reduction <maximumf>, %45, %cst_17 [2] : vector<1x8x8xf32> to vector<1x8xf32>
    %51 = vector.shape_cast %50 : vector<1x8xf32> to vector<1x8x1xf32>
    %52 = vector.broadcast %51 : vector<1x8x1xf32> to vector<1x8x8xf32>
    %53 = arith.subf %45, %52 : vector<1x8x8xf32>
    %54 = math.exp %53 : vector<1x8x8xf32>
    %cst_18 = arith.constant dense<0.000000e+00> : vector<1x8xf32>
    %55 = vector.multi_reduction <add>, %54, %cst_18 [2] : vector<1x8x8xf32> to vector<1x8xf32>
    %56 = vector.shape_cast %55 : vector<1x8xf32> to vector<1x8x1xf32>
    %57 = vector.broadcast %56 : vector<1x8x1xf32> to vector<1x8x8xf32>
    %58 = arith.divf %54, %57 : vector<1x8x8xf32>
    %cst_19 = arith.constant 0.353553385 : f32
    %59 = vector.broadcast %cst_19 : f32 to vector<1x8x8xf32>
    %60 = arith.mulf %58, %59 : vector<1x8x8xf32>
    %cst_20 = arith.constant dense<0xFF800000> : vector<1x8xf32>
    %61 = vector.multi_reduction <maximumf>, %47, %cst_20 [1] : vector<1x8x8xf32> to vector<1x8xf32>
    %62 = vector.shape_cast %61 : vector<1x8xf32> to vector<1x1x8xf32>
    %63 = vector.broadcast %62 : vector<1x1x8xf32> to vector<1x8x8xf32>
    %64 = arith.subf %47, %63 : vector<1x8x8xf32>
    %65 = math.exp %64 : vector<1x8x8xf32>
    %cst_21 = arith.constant dense<0.000000e+00> : vector<1x8xf32>
    %66 = vector.multi_reduction <add>, %65, %cst_21 [1] : vector<1x8x8xf32> to vector<1x8xf32>
    %67 = vector.shape_cast %66 : vector<1x8xf32> to vector<1x1x8xf32>
    %68 = vector.broadcast %67 : vector<1x1x8xf32> to vector<1x8x8xf32>
    %69 = arith.divf %65, %68 : vector<1x8x8xf32>
    %cst_22 = arith.constant dense<0.000000e+00> : vector<1x8x8xf32>
    %70 = tpu.matmul %69, %49, %cst_22 {dimension_numbers = #tpu.dot_dimension_numbers<[1], [1], [2], [2], [0, 0, 0, 2, 1, 2], [0], [0]>} : vector<1x8x8xf32>, vector<1x8x8xf32>, vector<1x8x8xf32> -> vector<1x8x8xf32>
    %cst_23 = arith.constant dense<0.000000e+00> : vector<1x8x8xf32>
    %71 = tpu.matmul %60, %70, %cst_23 {dimension_numbers = #tpu.dot_dimension_numbers<[2], [1], [1], [2], [0, 0, 0, 1, 1, 2], [0], [0]>} : vector<1x8x8xf32>, vector<1x8x8xf32>, vector<1x8x8xf32> -> vector<1x8x8xf32>
    %72 = vector.shape_cast %71 : vector<1x8x8xf32> to vector<8x8xf32>
    %c0_24 = arith.constant 0 : index
    %c8 = arith.constant 8 : index
    %73 = vector.load %arg15[%c0_24, %c8] : memref<8x32xf32, #tpu.memory_space<vmem>>, vector<8x8xf32>
    tpu.vector_store %arg15[%c0_24, %c8], %72 {strides = array<i32>} : memref<8x32xf32, #tpu.memory_space<vmem>>, vector<8x8xf32>,
    %74 = vector.extract_strided_slice %11 {offsets = [0, 16], sizes = [8, 8], strides = [1, 1]} : vector<8x32xf32> to vector<8x8xf32>
    %75 = vector.shape_cast %74 : vector<8x8xf32> to vector<1x8x8xf32>
    %76 = vector.extract_strided_slice %13 {offsets = [0, 16], sizes = [8, 8], strides = [1, 1]} : vector<8x32xf32> to vector<8x8xf32>
    %77 = vector.shape_cast %76 : vector<8x8xf32> to vector<1x8x8xf32>
    %78 = vector.extract_strided_slice %12 {offsets = [0, 16], sizes = [8, 8], strides = [1, 1]} : vector<8x32xf32> to vector<8x8xf32>
    %79 = vector.shape_cast %78 : vector<8x8xf32> to vector<1x8x8xf32>
    %cst_25 = arith.constant dense<0xFF800000> : vector<1x8xf32>
    %80 = vector.multi_reduction <maximumf>, %75, %cst_25 [2] : vector<1x8x8xf32> to vector<1x8xf32>
    %81 = vector.shape_cast %80 : vector<1x8xf32> to vector<1x8x1xf32>
    %82 = vector.broadcast %81 : vector<1x8x1xf32> to vector<1x8x8xf32>
    %83 = arith.subf %75, %82 : vector<1x8x8xf32>
    %84 = math.exp %83 : vector<1x8x8xf32>
    %cst_26 = arith.constant dense<0.000000e+00> : vector<1x8xf32>
    %85 = vector.multi_reduction <add>, %84, %cst_26 [2] : vector<1x8x8xf32> to vector<1x8xf32>
    %86 = vector.shape_cast %85 : vector<1x8xf32> to vector<1x8x1xf32>
    %87 = vector.broadcast %86 : vector<1x8x1xf32> to vector<1x8x8xf32>
    %88 = arith.divf %84, %87 : vector<1x8x8xf32>
    %cst_27 = arith.constant 0.353553385 : f32
    %89 = vector.broadcast %cst_27 : f32 to vector<1x8x8xf32>
    %90 = arith.mulf %88, %89 : vector<1x8x8xf32>
    %cst_28 = arith.constant dense<0xFF800000> : vector<1x8xf32>
    %91 = vector.multi_reduction <maximumf>, %77, %cst_28 [1] : vector<1x8x8xf32> to vector<1x8xf32>
    %92 = vector.shape_cast %91 : vector<1x8xf32> to vector<1x1x8xf32>
    %93 = vector.broadcast %92 : vector<1x1x8xf32> to vector<1x8x8xf32>
    %94 = arith.subf %77, %93 : vector<1x8x8xf32>
    %95 = math.exp %94 : vector<1x8x8xf32>
    %cst_29 = arith.constant dense<0.000000e+00> : vector<1x8xf32>
    %96 = vector.multi_reduction <add>, %95, %cst_29 [1] : vector<1x8x8xf32> to vector<1x8xf32>
    %97 = vector.shape_cast %96 : vector<1x8xf32> to vector<1x1x8xf32>
    %98 = vector.broadcast %97 : vector<1x1x8xf32> to vector<1x8x8xf32>
    %99 = arith.divf %95, %98 : vector<1x8x8xf32>
    %cst_30 = arith.constant dense<0.000000e+00> : vector<1x8x8xf32>
    %100 = tpu.matmul %99, %79, %cst_30 {dimension_numbers = #tpu.dot_dimension_numbers<[1], [1], [2], [2], [0, 0, 0, 2, 1, 2], [0], [0]>} : vector<1x8x8xf32>, vector<1x8x8xf32>, vector<1x8x8xf32> -> vector<1x8x8xf32>
    %cst_31 = arith.constant dense<0.000000e+00> : vector<1x8x8xf32>
    %101 = tpu.matmul %90, %100, %cst_31 {dimension_numbers = #tpu.dot_dimension_numbers<[2], [1], [1], [2], [0, 0, 0, 1, 1, 2], [0], [0]>} : vector<1x8x8xf32>, vector<1x8x8xf32>, vector<1x8x8xf32> -> vector<1x8x8xf32>
    %102 = vector.shape_cast %101 : vector<1x8x8xf32> to vector<8x8xf32>
    %c0_32 = arith.constant 0 : index
    %c16 = arith.constant 16 : index
    %103 = vector.load %arg15[%c0_32, %c16] : memref<8x32xf32, #tpu.memory_space<vmem>>, vector<8x8xf32>
    tpu.vector_store %arg15[%c0_32, %c16], %102 {strides = array<i32>} : memref<8x32xf32, #tpu.memory_space<vmem>>, vector<8x8xf32>,
    %104 = vector.extract_strided_slice %11 {offsets = [0, 24], sizes = [8, 8], strides = [1, 1]} : vector<8x32xf32> to vector<8x8xf32>
    %105 = vector.shape_cast %104 : vector<8x8xf32> to vector<1x8x8xf32>
    %106 = vector.extract_strided_slice %13 {offsets = [0, 24], sizes = [8, 8], strides = [1, 1]} : vector<8x32xf32> to vector<8x8xf32>
    %107 = vector.shape_cast %106 : vector<8x8xf32> to vector<1x8x8xf32>
    %108 = vector.extract_strided_slice %12 {offsets = [0, 24], sizes = [8, 8], strides = [1, 1]} : vector<8x32xf32> to vector<8x8xf32>
    %109 = vector.shape_cast %108 : vector<8x8xf32> to vector<1x8x8xf32>
    %cst_33 = arith.constant dense<0xFF800000> : vector<1x8xf32>
    %110 = vector.multi_reduction <maximumf>, %105, %cst_33 [2] : vector<1x8x8xf32> to vector<1x8xf32>
    %111 = vector.shape_cast %110 : vector<1x8xf32> to vector<1x8x1xf32>
    %112 = vector.broadcast %111 : vector<1x8x1xf32> to vector<1x8x8xf32>
    %113 = arith.subf %105, %112 : vector<1x8x8xf32>
    %114 = math.exp %113 : vector<1x8x8xf32>
    %cst_34 = arith.constant dense<0.000000e+00> : vector<1x8xf32>
    %115 = vector.multi_reduction <add>, %114, %cst_34 [2] : vector<1x8x8xf32> to vector<1x8xf32>
    %116 = vector.shape_cast %115 : vector<1x8xf32> to vector<1x8x1xf32>
    %117 = vector.broadcast %116 : vector<1x8x1xf32> to vector<1x8x8xf32>
    %118 = arith.divf %114, %117 : vector<1x8x8xf32>
    %cst_35 = arith.constant 0.353553385 : f32
    %119 = vector.broadcast %cst_35 : f32 to vector<1x8x8xf32>
    %120 = arith.mulf %118, %119 : vector<1x8x8xf32>
    %cst_36 = arith.constant dense<0xFF800000> : vector<1x8xf32>
    %121 = vector.multi_reduction <maximumf>, %107, %cst_36 [1] : vector<1x8x8xf32> to vector<1x8xf32>
    %122 = vector.shape_cast %121 : vector<1x8xf32> to vector<1x1x8xf32>
    %123 = vector.broadcast %122 : vector<1x1x8xf32> to vector<1x8x8xf32>
    %124 = arith.subf %107, %123 : vector<1x8x8xf32>
    %125 = math.exp %124 : vector<1x8x8xf32>
    %cst_37 = arith.constant dense<0.000000e+00> : vector<1x8xf32>
    %126 = vector.multi_reduction <add>, %125, %cst_37 [1] : vector<1x8x8xf32> to vector<1x8xf32>
    %127 = vector.shape_cast %126 : vector<1x8xf32> to vector<1x1x8xf32>
    %128 = vector.broadcast %127 : vector<1x1x8xf32> to vector<1x8x8xf32>
    %129 = arith.divf %125, %128 : vector<1x8x8xf32>
    %cst_38 = arith.constant dense<0.000000e+00> : vector<1x8x8xf32>
    %130 = tpu.matmul %129, %109, %cst_38 {dimension_numbers = #tpu.dot_dimension_numbers<[1], [1], [2], [2], [0, 0, 0, 2, 1, 2], [0], [0]>} : vector<1x8x8xf32>, vector<1x8x8xf32>, vector<1x8x8xf32> -> vector<1x8x8xf32>
    %cst_39 = arith.constant dense<0.000000e+00> : vector<1x8x8xf32>
    %131 = tpu.matmul %120, %130, %cst_39 {dimension_numbers = #tpu.dot_dimension_numbers<[2], [1], [1], [2], [0, 0, 0, 1, 1, 2], [0], [0]>} : vector<1x8x8xf32>, vector<1x8x8xf32>, vector<1x8x8xf32> -> vector<1x8x8xf32>
    %132 = vector.shape_cast %131 : vector<1x8x8xf32> to vector<8x8xf32>
    %c0_40 = arith.constant 0 : index
    %c24 = arith.constant 24 : index
    %133 = vector.load %arg15[%c0_40, %c24] : memref<8x32xf32, #tpu.memory_space<vmem>>, vector<8x8xf32>
    tpu.vector_store %arg15[%c0_40, %c24], %132 {strides = array<i32>} : memref<8x32xf32, #tpu.memory_space<vmem>>, vector<8x8xf32>,
    %c0_41 = arith.constant 0 : index
    %c0_42 = arith.constant 0 : index
    %134 = vector.load %arg15[%c0_41, %c0_42] : memref<8x32xf32, #tpu.memory_space<vmem>>, vector<8x32xf32>
    %135 = arith.addf %134, %3 : vector<8x32xf32>
    %cst_43 = arith.constant dense<0.000000e+00> : vector<8xf32>
    %136 = vector.multi_reduction <add>, %135, %cst_43 [1] : vector<8x32xf32> to vector<8xf32>
    %137 = vector.shape_cast %136 : vector<8xf32> to vector<8x1xf32>
    %cst_44 = arith.constant 3.200000e+01 : f32
    %138 = vector.broadcast %cst_44 : f32 to vector<8x1xf32>
    %139 = arith.divf %137, %138 : vector<8x1xf32>
    %140 = vector.broadcast %139 : vector<8x1xf32> to vector<8x32xf32>
    %141 = arith.subf %135, %140 : vector<8x32xf32>
    %142 = arith.mulf %141, %141 : vector<8x32xf32>
    %cst_45 = arith.constant dense<0.000000e+00> : vector<8xf32>
    %143 = vector.multi_reduction <add>, %142, %cst_45 [1] : vector<8x32xf32> to vector<8xf32>
    %144 = vector.shape_cast %143 : vector<8xf32> to vector<8x1xf32>
    %cst_46 = arith.constant 3.200000e+01 : f32
    %145 = vector.broadcast %cst_46 : f32 to vector<8x1xf32>
    %146 = arith.divf %144, %145 : vector<8x1xf32>
    %147 = vector.broadcast %139 : vector<8x1xf32> to vector<8x32xf32>
    %148 = arith.subf %135, %147 : vector<8x32xf32>
    %cst_47 = arith.constant 9.99999974E-6 : f32
    %149 = vector.broadcast %cst_47 : f32 to vector<8x1xf32>
    %150 = arith.addf %146, %149 : vector<8x1xf32>
    %151 = math.rsqrt %150 : vector<8x1xf32>
    %152 = vector.broadcast %151 : vector<8x1xf32> to vector<8x32xf32>
    %153 = arith.mulf %148, %152 : vector<8x32xf32>
    %c0_48 = arith.constant 0 : index
    %c0_49 = arith.constant 0 : index
    %c0_50 = arith.constant 0 : index
    %154 = vector.load %arg5[%c0_48, %c0_49, %c0_50] : memref<1x1x32xf32, #tpu.memory_space<vmem>>, vector<1x1x32xf32>
    %155 = vector.shape_cast %154 : vector<1x1x32xf32> to vector<1x32xf32>
    %156 = vector.broadcast %155 : vector<1x32xf32> to vector<8x32xf32>
    %157 = arith.mulf %153, %156 : vector<8x32xf32>
    %c0_51 = arith.constant 0 : index
    %c0_52 = arith.constant 0 : index
    %c0_53 = arith.constant 0 : index
    %158 = vector.load %arg6[%c0_51, %c0_52, %c0_53] : memref<1x1x32xf32, #tpu.memory_space<vmem>>, vector<1x1x32xf32>
    %159 = vector.shape_cast %158 : vector<1x1x32xf32> to vector<1x32xf32>
    %160 = vector.broadcast %159 : vector<1x32xf32> to vector<8x32xf32>
    %161 = arith.addf %157, %160 : vector<8x32xf32>
    %c0_54 = arith.constant 0 : index
    %c0_55 = arith.constant 0 : index
    %c0_56 = arith.constant 0 : index
    %162 = vector.load %arg7[%c0_54, %c0_55, %c0_56] : memref<1x32x64xf32, #tpu.memory_space<vmem>>, vector<1x32x64xf32>
    %163 = vector.shape_cast %162 : vector<1x32x64xf32> to vector<32x64xf32>
    %cst_57 = arith.constant dense<0.000000e+00> : vector<8x64xf32>
    %164 = tpu.matmul %161, %163, %cst_57 {dimension_numbers = #tpu.dot_dimension_numbers<[1], [0], [0], [1], [0, 0, 1, 1], [], []>} : vector<8x32xf32>, vector<32x64xf32>, vector<8x64xf32> -> vector<8x64xf32>
    %c0_58 = arith.constant 0 : index
    %c0_59 = arith.constant 0 : index
    %c0_60 = arith.constant 0 : index
    %165 = vector.load %arg8[%c0_58, %c0_59, %c0_60] : memref<1x1x64xf32, #tpu.memory_space<vmem>>, vector<1x1x64xf32>
    %166 = vector.shape_cast %165 : vector<1x1x64xf32> to vector<1x64xf32>
    %167 = vector.broadcast %166 : vector<1x64xf32> to vector<8x64xf32>
    %168 = arith.addf %164, %167 : vector<8x64xf32>
    %cst_61 = arith.constant 0.000000e+00 : f32
    %169 = vector.broadcast %cst_61 : f32 to vector<8x64xf32>
    %170 = arith.maximumf %168, %169 : vector<8x64xf32>
    %c0_62 = arith.constant 0 : index
    %c0_63 = arith.constant 0 : index
    %c0_64 = arith.constant 0 : index
    %171 = vector.load %arg9[%c0_62, %c0_63, %c0_64] : memref<1x64x32xf32, #tpu.memory_space<vmem>>, vector<1x64x32xf32>
    %172 = vector.shape_cast %171 : vector<1x64x32xf32> to vector<64x32xf32>
    %cst_65 = arith.constant dense<0.000000e+00> : vector<8x32xf32>
    %173 = tpu.matmul %170, %172, %cst_65 {dimension_numbers = #tpu.dot_dimension_numbers<[1], [0], [0], [1], [0, 0, 1, 1], [], []>} : vector<8x64xf32>, vector<64x32xf32>, vector<8x32xf32> -> vector<8x32xf32>
    %c0_66 = arith.constant 0 : index
    %c0_67 = arith.constant 0 : index
    %c0_68 = arith.constant 0 : index
    %174 = vector.load %arg10[%c0_66, %c0_67, %c0_68] : memref<1x1x32xf32, #tpu.memory_space<vmem>>, vector<1x1x32xf32>
    %175 = vector.shape_cast %174 : vector<1x1x32xf32> to vector<1x32xf32>
    %176 = vector.broadcast %175 : vector<1x32xf32> to vector<8x32xf32>
    %177 = arith.addf %173, %176 : vector<8x32xf32>
    %178 = arith.addf %177, %161 : vector<8x32xf32>
    %cst_69 = arith.constant dense<0.000000e+00> : vector<8xf32>
    %179 = vector.multi_reduction <add>, %178, %cst_69 [1] : vector<8x32xf32> to vector<8xf32>
    %180 = vector.shape_cast %179 : vector<8xf32> to vector<8x1xf32>
    %cst_70 = arith.constant 3.200000e+01 : f32
    %181 = vector.broadcast %cst_70 : f32 to vector<8x1xf32>
    %182 = arith.divf %180, %181 : vector<8x1xf32>
    %183 = vector.broadcast %182 : vector<8x1xf32> to vector<8x32xf32>
    %184 = arith.subf %178, %183 : vector<8x32xf32>
    %185 = arith.mulf %184, %184 : vector<8x32xf32>
    %cst_71 = arith.constant dense<0.000000e+00> : vector<8xf32>
    %186 = vector.multi_reduction <add>, %185, %cst_71 [1] : vector<8x32xf32> to vector<8xf32>
    %187 = vector.shape_cast %186 : vector<8xf32> to vector<8x1xf32>
    %cst_72 = arith.constant 3.200000e+01 : f32
    %188 = vector.broadcast %cst_72 : f32 to vector<8x1xf32>
    %189 = arith.divf %187, %188 : vector<8x1xf32>
    %190 = vector.broadcast %182 : vector<8x1xf32> to vector<8x32xf32>
    %191 = arith.subf %178, %190 : vector<8x32xf32>
    %cst_73 = arith.constant 9.99999974E-6 : f32
    %192 = vector.broadcast %cst_73 : f32 to vector<8x1xf32>
    %193 = arith.addf %189, %192 : vector<8x1xf32>
    %194 = math.rsqrt %193 : vector<8x1xf32>
    %195 = vector.broadcast %194 : vector<8x1xf32> to vector<8x32xf32>
    %196 = arith.mulf %191, %195 : vector<8x32xf32>
    %c0_74 = arith.constant 0 : index
    %c0_75 = arith.constant 0 : index
    %c0_76 = arith.constant 0 : index
    %197 = vector.load %arg11[%c0_74, %c0_75, %c0_76] : memref<1x1x32xf32, #tpu.memory_space<vmem>>, vector<1x1x32xf32>
    %198 = vector.shape_cast %197 : vector<1x1x32xf32> to vector<1x32xf32>
    %199 = vector.broadcast %198 : vector<1x32xf32> to vector<8x32xf32>
    %200 = arith.mulf %196, %199 : vector<8x32xf32>
    %c0_77 = arith.constant 0 : index
    %c0_78 = arith.constant 0 : index
    %c0_79 = arith.constant 0 : index
    %201 = vector.load %arg12[%c0_77, %c0_78, %c0_79] : memref<1x1x32xf32, #tpu.memory_space<vmem>>, vector<1x1x32xf32>
    %202 = vector.shape_cast %201 : vector<1x1x32xf32> to vector<1x32xf32>
    %203 = vector.broadcast %202 : vector<1x32xf32> to vector<8x32xf32>
    %204 = arith.addf %200, %203 : vector<8x32xf32>
    %c0_80 = arith.constant 0 : index
    %c0_81 = arith.constant 0 : index
    %205 = vector.load %arg14[%c0_80, %c0_81] : memref<8x32xf32, #tpu.memory_space<vmem>>, vector<8x32xf32>
    tpu.vector_store %arg14[%c0_80, %c0_81], %204 {strides = array<i32>} : memref<8x32xf32, #tpu.memory_space<vmem>>, vector<8x32xf32>,
    %c1_i32 = arith.constant 1 : i32
    %206 = arith.cmpi eq, %arg1, %c1_i32 : i32
    %207 = arith.extui %206 : i1 to i32
    %c0_i32_82 = arith.constant 0 : i32
    %208 = arith.cmpi ne, %207, %c0_i32_82 : i32
    scf.if %208 {
      %c0_83 = arith.constant 0 : index
      %c0_84 = arith.constant 0 : index
      %209 = vector.load %arg13[%c0_83, %c0_84] : memref<8x32xf32, #tpu.memory_space<vmem>>, vector<8x32xf32>
      tpu.vector_store %arg13[%c0_83, %c0_84], %204 {strides = array<i32>} : memref<8x32xf32, #tpu.memory_space<vmem>>, vector<8x32xf32>,
    } else {
    }
    return
  }
  func.func @transform_0(%arg0: i32, %arg1: i32) -> (i32, i32) {
    %c0_i32 = arith.constant 0 : i32
    %c0_i32_0 = arith.constant 0 : i32
    return %arg0, %c0_i32 : i32, i32
  }
  func.func @transform_1(%arg0: i32, %arg1: i32) -> (i32, i32, i32) {
    %c0_i32 = arith.constant 0 : i32
    %c0_i32_0 = arith.constant 0 : i32
    %c0_i32_1 = arith.constant 0 : i32
    return %arg1, %c0_i32, %c0_i32_0 : i32, i32, i32
  }
  func.func @transform_2(%arg0: i32, %arg1: i32) -> (i32, i32, i32) {
    %c0_i32 = arith.constant 0 : i32
    %c0_i32_0 = arith.constant 0 : i32
    %c0_i32_1 = arith.constant 0 : i32
    return %arg1, %c0_i32, %c0_i32_0 : i32, i32, i32
  }
  func.func @transform_3(%arg0: i32, %arg1: i32) -> (i32, i32, i32) {
    %c0_i32 = arith.constant 0 : i32
    %c0_i32_0 = arith.constant 0 : i32
    %c0_i32_1 = arith.constant 0 : i32
    return %arg1, %c0_i32, %c0_i32_0 : i32, i32, i32
  }
  func.func @transform_4(%arg0: i32, %arg1: i32) -> (i32, i32, i32) {
    %c0_i32 = arith.constant 0 : i32
    %c0_i32_0 = arith.constant 0 : i32
    %c0_i32_1 = arith.constant 0 : i32
    return %arg1, %c0_i32, %c0_i32_0 : i32, i32, i32
  }
  func.func @transform_5(%arg0: i32, %arg1: i32) -> (i32, i32, i32) {
    %c0_i32 = arith.constant 0 : i32
    %c0_i32_0 = arith.constant 0 : i32
    %c0_i32_1 = arith.constant 0 : i32
    return %arg1, %c0_i32, %c0_i32_0 : i32, i32, i32
  }
  func.func @transform_6(%arg0: i32, %arg1: i32) -> (i32, i32, i32) {
    %c0_i32 = arith.constant 0 : i32
    %c0_i32_0 = arith.constant 0 : i32
    %c0_i32_1 = arith.constant 0 : i32
    return %arg1, %c0_i32, %c0_i32_0 : i32, i32, i32
  }
  func.func @transform_7(%arg0: i32, %arg1: i32) -> (i32, i32, i32) {
    %c0_i32 = arith.constant 0 : i32
    %c0_i32_0 = arith.constant 0 : i32
    %c0_i32_1 = arith.constant 0 : i32
    return %arg1, %c0_i32, %c0_i32_0 : i32, i32, i32
  }
  func.func @transform_8(%arg0: i32, %arg1: i32) -> (i32, i32, i32) {
    %c0_i32 = arith.constant 0 : i32
    %c0_i32_0 = arith.constant 0 : i32
    %c0_i32_1 = arith.constant 0 : i32
    return %arg1, %c0_i32, %c0_i32_0 : i32, i32, i32
  }
  func.func @transform_9(%arg0: i32, %arg1: i32) -> (i32, i32, i32) {
    %c0_i32 = arith.constant 0 : i32
    %c0_i32_0 = arith.constant 0 : i32
    %c0_i32_1 = arith.constant 0 : i32
    return %arg1, %c0_i32, %c0_i32_0 : i32, i32, i32
  }
  func.func @transform_10(%arg0: i32, %arg1: i32) -> (i32, i32, i32) {
    %c0_i32 = arith.constant 0 : i32
    %c0_i32_0 = arith.constant 0 : i32
    %c0_i32_1 = arith.constant 0 : i32
    return %arg1, %c0_i32, %c0_i32_0 : i32, i32, i32
  }
  func.func @transform_11(%arg0: i32, %arg1: i32) -> (i32, i32) {
    %c0_i32 = arith.constant 0 : i32
    %c0_i32_0 = arith.constant 0 : i32
    return %arg0, %c0_i32 : i32, i32
  }
}

</mosaic_0001>

<llo_original>
// kernel: tpu_custom_call.1
$region0: #{tpu_custom_call.1}
  #allocation0 [shape = 'u32[]', space=smem, size = 0x4, offset = 0x4, fixed_abs, tag = 'smem constant byte address 0x4 - core index']
  #allocation1 [shape = 'u32[72,128]{1,0:T(1,128)}', space=vmem, size = 0x9000, scoped, tag = 'internal scratch']
  #allocation2 [shape = 'f32[8,32]{1,0:T(8,128)}', space=vmem, size = 0x1000, scoped, tag = 'scratch operand']
  #allocation3 [shape = 'f32[8,32]{1,0:T(8,128)}', space=vmem, size = 0x1000, scoped, tag = 'scratch operand']
  %s0 = inlined_call_operand.vmem [shape: f32[16,32], index: 0, kind: input, shape index: {}]
  %s1 = inlined_call_operand.vmem [shape: f32[2,32,96], index: 1, kind: input, shape index: {}]
  %s2 = inlined_call_operand.vmem [shape: f32[2,1,96], index: 2, kind: input, shape index: {}]
  %s3 = inlined_call_operand.vmem [shape: f32[2,1,32], index: 3, kind: input, shape index: {}]
  %s4 = inlined_call_operand.vmem [shape: f32[2,1,32], index: 4, kind: input, shape index: {}]
  %s5 = inlined_call_operand.vmem [shape: f32[2,32,64], index: 5, kind: input, shape index: {}]
  %s6 = inlined_call_operand.vmem [shape: f32[2,1,64], index: 6, kind: input, shape index: {}]
  %s7 = inlined_call_operand.vmem [shape: f32[2,64,32], index: 7, kind: input, shape index: {}]
  %s8 = inlined_call_operand.vmem [shape: f32[2,1,32], index: 8, kind: input, shape index: {}]
  %s9 = inlined_call_operand.vmem [shape: f32[2,1,32], index: 9, kind: input, shape index: {}]
  %s10 = inlined_call_operand.vmem [shape: f32[2,1,32], index: 10, kind: input, shape index: {}]
  %s11 = inlined_call_operand.hbm [shape: f32[16,32], index: 11, kind: output, shape index: {}]
  %s12 = sld [smem:[#allocation0]]
  $region85: #{tpu_custom_call.1} parent=0
    _
  %s14 = ssub.s32 1, %s12
  %s15 = scalar_select 0, %s14, %s12
  $region1: #{tpu_custom_call.1} parent=0
    #allocation4 [shape = 'u8[8192]{0}', space=vmem, size = 0x2000, scoped, tag = 'output window, operand 0']
    #allocation5 [shape = 's32[2]{0}', space=sflag, size = 0x8, scoped, tag = 'scoped memory for tpu_custom_call.1']
    %16 = vsyncpa [#allocation5], 0
    %s17 = scalar_lea.sflag [#allocation5], 1
    %18 = vsyncpa %s17, 0
    loop: start=0, step=1, limit=6
    $region2: #{tpu_custom_call.1} parent=1 // loop_pre_header
      _
    $region3: #{tpu_custom_call.1} parent=1 // loop_header
      %s20 = sphi 0, %s24
      %p21 = scmp.ge.s32.totalorder %s20, 6
      %s27 = sphi 0, %s39
      %s28 = sphi 0, %s35
      %s29 = sphi 0, %s27
      %s30 = sphi 0, %s28
      %s31 = sphi 0, %s29
      %s32 = sphi 0, %s30
      %s42 = sphi 0, %s44
      %s45 = sphi 0, %s42
      %s46 = sphi 0, %s45
      %s62 = sphi 0, %s46
      %s68 = sphi 0, %s70
      %s71 = sphi 0, %s68
      %s72 = sphi 0, %s71
      %s88 = sphi 0, %s72
      %s94 = sphi 0, %s96
      %s97 = sphi 0, %s94
      %s98 = sphi 0, %s97
      %s114 = sphi 0, %s98
      %s120 = sphi 0, %s122
      %s123 = sphi 0, %s120
      %s124 = sphi 0, %s123
      %s140 = sphi 0, %s124
      %s146 = sphi 0, %s148
      %s149 = sphi 0, %s146
      %s150 = sphi 0, %s149
      %s166 = sphi 0, %s150
      %s172 = sphi 0, %s174
      %s175 = sphi 0, %s172
      %s176 = sphi 0, %s175
      %s192 = sphi 0, %s176
      %s198 = sphi 0, %s200
      %s201 = sphi 0, %s198
      %s202 = sphi 0, %s201
      %s218 = sphi 0, %s202
      %s224 = sphi 0, %s226
      %s227 = sphi 0, %s224
      %s228 = sphi 0, %s227
      %s244 = sphi 0, %s228
      %s250 = sphi 0, %s252
      %s253 = sphi 0, %s250
      %s254 = sphi 0, %s253
      %s270 = sphi 0, %s254
      %s276 = sphi 0, %s278
      %s279 = sphi 0, %s276
      %s280 = sphi 0, %s279
      %s296 = sphi 0, %s280
      %s302 = sphi 0, %s304
      %s305 = sphi 0, %s302
      %s306 = sphi 0, %s305
      %s322 = sphi 0, %s306
      %s328 = sphi 0, %s330
      %s331 = sphi 0, %s328
      %s332 = sphi 0, %s331
      %s348 = sphi 0, %s332
    $region4: #{tpu_custom_call.1} parent=1 // loop_header_branch
      %23 = sbr.rel (%p21) target = $region8
    $region5: #{tpu_custom_call.1} parent=1 // loop_body
      %s25 = ssub.s32 %s20, 1
      %s26 = ssub.s32 %s20, 2
      %s33 = sadd.s32 1, %s28
      %p34 = scmp.ge.s32.totalorder %s33, 2
      %s35 = scalar_select %p34, 0, %s33
      %s36 = sadd.s32 1, %s27
      %s37 = scalar_select %p34, %s36, %s27
      %p38 = scmp.ge.s32.totalorder %s37, 2
      %s39 = scalar_select %p38, 0, %s37
      %s40 = ssub.s32 %s27, %s39
      %p41 = scmp.eq.s32.totalorder %s40, 0
      %s43 = sadd.s32 %s42, 1
      %s44 = scalar_select %p41, %s42, %s43
      %p47 = pneg %p41
      %p48 = scmp.eq.s32.totalorder %s20, 3
      %p49 = por %p47, %p48
      %p50 = scmp.ne.s32.totalorder %s42, %s45
      %p51 = scmp.eq.s32.totalorder %s20, 0
      %p52 = por %p50, %p51
      %p53 = scmp.ne.s32.totalorder %s42, %s45
      %p54 = scmp.eq.s32.totalorder %s25, 3
      %p55 = por %p53, %p54
      %p56 = scmp.ne.s32.totalorder %s45, %s46
      %p57 = scmp.eq.s32.totalorder %s25, 0
      %p58 = por %p56, %p57
      %p59 = scmp.ne.s32.totalorder %s45, %s46
      %p60 = scmp.eq.s32.totalorder %s26, 3
      %p61 = por %p59, %p60
      %p63 = scmp.ne.s32.totalorder %s46, %s62
      %p64 = scmp.eq.s32.totalorder %s26, 0
      %p65 = por %p63, %p64
      %s66 = ssub.s32 %s28, %s35
      %p67 = scmp.eq.s32.totalorder %s66, 0
      %s69 = sadd.s32 %s68, 1
      %s70 = scalar_select %p67, %s68, %s69
      %p73 = pneg %p67
      %p74 = scmp.eq.s32.totalorder %s20, 3
      %p75 = por %p73, %p74
      %p76 = scmp.ne.s32.totalorder %s68, %s71
      %p77 = scmp.eq.s32.totalorder %s20, 0
      %p78 = por %p76, %p77
      %p79 = scmp.ne.s32.totalorder %s68, %s71
      %p80 = scmp.eq.s32.totalorder %s25, 3
      %p81 = por %p79, %p80
      %p82 = scmp.ne.s32.totalorder %s71, %s72
      %p83 = scmp.eq.s32.totalorder %s25, 0
      %p84 = por %p82, %p83
      %p85 = scmp.ne.s32.totalorder %s71, %s72
      %p86 = scmp.eq.s32.totalorder %s26, 3
      %p87 = por %p85, %p86
      %p89 = scmp.ne.s32.totalorder %s72, %s88
      %p90 = scmp.eq.s32.totalorder %s26, 0
      %p91 = por %p89, %p90
      %s92 = ssub.s32 %s28, %s35
      %p93 = scmp.eq.s32.totalorder %s92, 0
      %s95 = sadd.s32 %s94, 1
      %s96 = scalar_select %p93, %s94, %s95
      %p99 = pneg %p93
      %p100 = scmp.eq.s32.totalorder %s20, 3
      %p101 = por %p99, %p100
      %p102 = scmp.ne.s32.totalorder %s94, %s97
      %p103 = scmp.eq.s32.totalorder %s20, 0
      %p104 = por %p102, %p103
      %p105 = scmp.ne.s32.totalorder %s94, %s97
      %p106 = scmp.eq.s32.totalorder %s25, 3
      %p107 = por %p105, %p106
      %p108 = scmp.ne.s32.totalorder %s97, %s98
      %p109 = scmp.eq.s32.totalorder %s25, 0
      %p110 = por %p108, %p109
      %p111 = scmp.ne.s32.totalorder %s97, %s98
      %p112 = scmp.eq.s32.totalorder %s26, 3
      %p113 = por %p111, %p112
      %p115 = scmp.ne.s32.totalorder %s98, %s114
      %p116 = scmp.eq.s32.totalorder %s26, 0
      %p117 = por %p115, %p116
      %s118 = ssub.s32 %s28, %s35
      %p119 = scmp.eq.s32.totalorder %s118, 0
      %s121 = sadd.s32 %s120, 1
      %s122 = scalar_select %p119, %s120, %s121
      %p125 = pneg %p119
      %p126 = scmp.eq.s32.totalorder %s20, 3
      %p127 = por %p125, %p126
      %p128 = scmp.ne.s32.totalorder %s120, %s123
      %p129 = scmp.eq.s32.totalorder %s20, 0
      %p130 = por %p128, %p129
      %p131 = scmp.ne.s32.totalorder %s120, %s123
      %p132 = scmp.eq.s32.totalorder %s25, 3
      %p133 = por %p131, %p132
      %p134 = scmp.ne.s32.totalorder %s123, %s124
      %p135 = scmp.eq.s32.totalorder %s25, 0
      %p136 = por %p134, %p135
      %p137 = scmp.ne.s32.totalorder %s123, %s124
      %p138 = scmp.eq.s32.totalorder %s26, 3
      %p139 = por %p137, %p138
      %p141 = scmp.ne.s32.totalorder %s124, %s140
      %p142 = scmp.eq.s32.totalorder %s26, 0
      %p143 = por %p141, %p142
      %s144 = ssub.s32 %s28, %s35
      %p145 = scmp.eq.s32.totalorder %s144, 0
      %s147 = sadd.s32 %s146, 1
      %s148 = scalar_select %p145, %s146, %s147
      %p151 = pneg %p145
      %p152 = scmp.eq.s32.totalorder %s20, 3
      %p153 = por %p151, %p152
      %p154 = scmp.ne.s32.totalorder %s146, %s149
      %p155 = scmp.eq.s32.totalorder %s20, 0
      %p156 = por %p154, %p155
      %p157 = scmp.ne.s32.totalorder %s146, %s149
      %p158 = scmp.eq.s32.totalorder %s25, 3
      %p159 = por %p157, %p158
      %p160 = scmp.ne.s32.totalorder %s149, %s150
      %p161 = scmp.eq.s32.totalorder %s25, 0
      %p162 = por %p160, %p161
      %p163 = scmp.ne.s32.totalorder %s149, %s150
      %p164 = scmp.eq.s32.totalorder %s26, 3
      %p165 = por %p163, %p164
      %p167 = scmp.ne.s32.totalorder %s150, %s166
      %p168 = scmp.eq.s32.totalorder %s26, 0
      %p169 = por %p167, %p168
      %s170 = ssub.s32 %s28, %s35
      %p171 = scmp.eq.s32.totalorder %s170, 0
      %s173 = sadd.s32 %s172, 1
      %s174 = scalar_select %p171, %s172, %s173
      %p177 = pneg %p171
      %p178 = scmp.eq.s32.totalorder %s20, 3
      %p179 = por %p177, %p178
      %p180 = scmp.ne.s32.totalorder %s172, %s175
      %p181 = scmp.eq.s32.totalorder %s20, 0
      %p182 = por %p180, %p181
      %p183 = scmp.ne.s32.totalorder %s172, %s175
      %p184 = scmp.eq.s32.totalorder %s25, 3
      %p185 = por %p183, %p184
      %p186 = scmp.ne.s32.totalorder %s175, %s176
      %p187 = scmp.eq.s32.totalorder %s25, 0
      %p188 = por %p186, %p187
      %p189 = scmp.ne.s32.totalorder %s175, %s176
      %p190 = scmp.eq.s32.totalorder %s26, 3
      %p191 = por %p189, %p190
      %p193 = scmp.ne.s32.totalorder %s176, %s192
      %p194 = scmp.eq.s32.totalorder %s26, 0
      %p195 = por %p193, %p194
      %s196 = ssub.s32 %s28, %s35
      %p197 = scmp.eq.s32.totalorder %s196, 0
      %s199 = sadd.s32 %s198, 1
      %s200 = scalar_select %p197, %s198, %s199
      %p203 = pneg %p197
      %p204 = scmp.eq.s32.totalorder %s20, 3
      %p205 = por %p203, %p204
      %p206 = scmp.ne.s32.totalorder %s198, %s201
      %p207 = scmp.eq.s32.totalorder %s20, 0
      %p208 = por %p206, %p207
      %p209 = scmp.ne.s32.totalorder %s198, %s201
      %p210 = scmp.eq.s32.totalorder %s25, 3
      %p211 = por %p209, %p210
      %p212 = scmp.ne.s32.totalorder %s201, %s202
      %p213 = scmp.eq.s32.totalorder %s25, 0
      %p214 = por %p212, %p213
      %p215 = scmp.ne.s32.totalorder %s201, %s202
      %p216 = scmp.eq.s32.totalorder %s26, 3
      %p217 = por %p215, %p216
      %p219 = scmp.ne.s32.totalorder %s202, %s218
      %p220 = scmp.eq.s32.totalorder %s26, 0
      %p221 = por %p219, %p220
      %s222 = ssub.s32 %s28, %s35
      %p223 = scmp.eq.s32.totalorder %s222, 0
      %s225 = sadd.s32 %s224, 1
      %s226 = scalar_select %p223, %s224, %s225
      %p229 = pneg %p223
      %p230 = scmp.eq.s32.totalorder %s20, 3
      %p231 = por %p229, %p230
      %p232 = scmp.ne.s32.totalorder %s224, %s227
      %p233 = scmp.eq.s32.totalorder %s20, 0
      %p234 = por %p232, %p233
      %p235 = scmp.ne.s32.totalorder %s224, %s227
      %p236 = scmp.eq.s32.totalorder %s25, 3
      %p237 = por %p235, %p236
      %p238 = scmp.ne.s32.totalorder %s227, %s228
      %p239 = scmp.eq.s32.totalorder %s25, 0
      %p240 = por %p238, %p239
      %p241 = scmp.ne.s32.totalorder %s227, %s228
      %p242 = scmp.eq.s32.totalorder %s26, 3
      %p243 = por %p241, %p242
      %p245 = scmp.ne.s32.totalorder %s228, %s244
      %p246 = scmp.eq.s32.totalorder %s26, 0
      %p247 = por %p245, %p246
      %s248 = ssub.s32 %s28, %s35
      %p249 = scmp.eq.s32.totalorder %s248, 0
      %s251 = sadd.s32 %s250, 1
      %s252 = scalar_select %p249, %s250, %s251
      %p255 = pneg %p249
      %p256 = scmp.eq.s32.totalorder %s20, 3
      %p257 = por %p255, %p256
      %p258 = scmp.ne.s32.totalorder %s250, %s253
      %p259 = scmp.eq.s32.totalorder %s20, 0
      %p260 = por %p258, %p259
      %p261 = scmp.ne.s32.totalorder %s250, %s253
      %p262 = scmp.eq.s32.totalorder %s25, 3
      %p263 = por %p261, %p262
      %p264 = scmp.ne.s32.totalorder %s253, %s254
      %p265 = scmp.eq.s32.totalorder %s25, 0
      %p266 = por %p264, %p265
      %p267 = scmp.ne.s32.totalorder %s253, %s254
      %p268 = scmp.eq.s32.totalorder %s26, 3
      %p269 = por %p267, %p268
      %p271 = scmp.ne.s32.totalorder %s254, %s270
      %p272 = scmp.eq.s32.totalorder %s26, 0
      %p273 = por %p271, %p272
      %s274 = ssub.s32 %s28, %s35
      %p275 = scmp.eq.s32.totalorder %s274, 0
      %s277 = sadd.s32 %s276, 1
      %s278 = scalar_select %p275, %s276, %s277
      %p281 = pneg %p275
      %p282 = scmp.eq.s32.totalorder %s20, 3
      %p283 = por %p281, %p282
      %p284 = scmp.ne.s32.totalorder %s276, %s279
      %p285 = scmp.eq.s32.totalorder %s20, 0
      %p286 = por %p284, %p285
      %p287 = scmp.ne.s32.totalorder %s276, %s279
      %p288 = scmp.eq.s32.totalorder %s25, 3
      %p289 = por %p287, %p288
      %p290 = scmp.ne.s32.totalorder %s279, %s280
      %p291 = scmp.eq.s32.totalorder %s25, 0
      %p292 = por %p290, %p291
      %p293 = scmp.ne.s32.totalorder %s279, %s280
      %p294 = scmp.eq.s32.totalorder %s26, 3
      %p295 = por %p293, %p294
      %p297 = scmp.ne.s32.totalorder %s280, %s296
      %p298 = scmp.eq.s32.totalorder %s26, 0
      %p299 = por %p297, %p298
      %s300 = ssub.s32 %s28, %s35
      %p301 = scmp.eq.s32.totalorder %s300, 0
      %s303 = sadd.s32 %s302, 1
      %s304 = scalar_select %p301, %s302, %s303
      %p307 = pneg %p301
      %p308 = scmp.eq.s32.totalorder %s20, 3
      %p309 = por %p307, %p308
      %p310 = scmp.ne.s32.totalorder %s302, %s305
      %p311 = scmp.eq.s32.totalorder %s20, 0
      %p312 = por %p310, %p311
      %p313 = scmp.ne.s32.totalorder %s302, %s305
      %p314 = scmp.eq.s32.totalorder %s25, 3
      %p315 = por %p313, %p314
      %p316 = scmp.ne.s32.totalorder %s305, %s306
      %p317 = scmp.eq.s32.totalorder %s25, 0
      %p318 = por %p316, %p317
      %p319 = scmp.ne.s32.totalorder %s305, %s306
      %p320 = scmp.eq.s32.totalorder %s26, 3
      %p321 = por %p319, %p320
      %p323 = scmp.ne.s32.totalorder %s306, %s322
      %p324 = scmp.eq.s32.totalorder %s26, 0
      %p325 = por %p323, %p324
      %s326 = ssub.s32 %s27, %s39
      %p327 = scmp.eq.s32.totalorder %s326, 0
      %s329 = sadd.s32 %s328, 1
      %s330 = scalar_select %p327, %s328, %s329
      %p333 = pneg %p327
      %p334 = scmp.eq.s32.totalorder %s20, 3
      %p335 = por %p333, %p334
      %p336 = scmp.ne.s32.totalorder %s328, %s331
      %p337 = scmp.eq.s32.totalorder %s20, 0
      %p338 = por %p336, %p337
      %p339 = scmp.ne.s32.totalorder %s328, %s331
      %p340 = scmp.eq.s32.totalorder %s25, 3
      %p341 = por %p339, %p340
      %p342 = scmp.ne.s32.totalorder %s331, %s332
      %p343 = scmp.eq.s32.totalorder %s25, 0
      %p344 = por %p342, %p343
      %p345 = scmp.ne.s32.totalorder %s331, %s332
      %p346 = scmp.eq.s32.totalorder %s26, 3
      %p347 = por %p345, %p346
      %p349 = scmp.ne.s32.totalorder %s332, %s348
      %p350 = scmp.eq.s32.totalorder %s26, 0
      %p351 = por %p349, %p350
      %p352 = scmp.le.s32.totalorder 1, %s20
      %p353 = scmp.lt.s32.totalorder %s20, 5
      %p354 = pnand %p352, %p353
      %p355 = pneg %p354
      // Predicated region
      $region9: #{tpu_custom_call.1} parent=5 // pred_check
        _
      $region10: #{tpu_custom_call.1} parent=5 // pred_check_branch
        %357 = sbr.rel (%p354) target = $region12
      $region11: #{tpu_custom_call.1} parent=5 // pred_region
        %s358 = ssub.s32 %s20, 1
      $region12: #{tpu_custom_call.1} parent=5 // pred_fallthru
        _
      %p359 = scmp.lt.s32.totalorder %s20, 4
      // Predicated region
      $region13: #{tpu_custom_call.1} parent=5 // pred_check
        %p360 = pneg %p359
      $region14: #{tpu_custom_call.1} parent=5 // pred_check_branch
        %362 = sbr.rel (%p360) target = $region16
      $region15: #{tpu_custom_call.1} parent=5 // pred_region
        // Predicated region
        $region17: #{tpu_custom_call.1} parent=15 // pred_check
          %p363 = pneg %p52
        $region18: #{tpu_custom_call.1} parent=15 // pred_check_branch
          %365 = sbr.rel (%p363) target = $region20
        $region19: #{tpu_custom_call.1} parent=15 // pred_region
          %p366 = scmp.lt.s32.totalorder %s27, 1
          %s367 = scalar_select %p366, %s27, 1
          %s368 = smul.addr %s367, 8
          %s369 = scalar_lea.vmem %s0, %s368
        $region20: #{tpu_custom_call.1} parent=15 // pred_fallthru
          _
        // Predicated region
        $region21: #{tpu_custom_call.1} parent=15 // pred_check
          %p370 = pneg %p78
        $region22: #{tpu_custom_call.1} parent=15 // pred_check_branch
          %372 = sbr.rel (%p370) target = $region24
        $region23: #{tpu_custom_call.1} parent=15 // pred_region
          %p373 = scmp.lt.s32.totalorder %s28, 1
          %s374 = scalar_select %p373, %s28, 1
          %s375 = smul.addr %s374, 4
          %s376 = smul.addr %s375, 8
          %s377 = scalar_lea.vmem %s1, %s376
        $region24: #{tpu_custom_call.1} parent=15 // pred_fallthru
          _
        // Predicated region
        $region25: #{tpu_custom_call.1} parent=15 // pred_check
          %p378 = pneg %p104
        $region26: #{tpu_custom_call.1} parent=15 // pred_check_branch
          %380 = sbr.rel (%p378) target = $region28
        $region27: #{tpu_custom_call.1} parent=15 // pred_region
          %p381 = scmp.lt.s32.totalorder %s28, 1
          %s382 = scalar_select %p381, %s28, 1
          %s383 = scalar_lea.vmem %s2, %s382
        $region28: #{tpu_custom_call.1} parent=15 // pred_fallthru
          _
        // Predicated region
        $region29: #{tpu_custom_call.1} parent=15 // pred_check
          %p384 = pneg %p130
        $region30: #{tpu_custom_call.1} parent=15 // pred_check_branch
          %386 = sbr.rel (%p384) target = $region32
        $region31: #{tpu_custom_call.1} parent=15 // pred_region
          %p387 = scmp.lt.s32.totalorder %s28, 1
          %s388 = scalar_select %p387, %s28, 1
          %s389 = scalar_lea.vmem %s3, %s388
        $region32: #{tpu_custom_call.1} parent=15 // pred_fallthru
          _
        // Predicated region
        $region33: #{tpu_custom_call.1} parent=15 // pred_check
          %p390 = pneg %p156
        $region34: #{tpu_custom_call.1} parent=15 // pred_check_branch
          %392 = sbr.rel (%p390) target = $region36
        $region35: #{tpu_custom_call.1} parent=15 // pred_region
          %p393 = scmp.lt.s32.totalorder %s28, 1
          %s394 = scalar_select %p393, %s28, 1
          %s395 = scalar_lea.vmem %s4, %s394
        $region36: #{tpu_custom_call.1} parent=15 // pred_fallthru
          _
        // Predicated region
        $region37: #{tpu_custom_call.1} parent=15 // pred_check
          %p396 = pneg %p182
        $region38: #{tpu_custom_call.1} parent=15 // pred_check_branch
          %398 = sbr.rel (%p396) target = $region40
        $region39: #{tpu_custom_call.1} parent=15 // pred_region
          %p399 = scmp.lt.s32.totalorder %s28, 1
          %s400 = scalar_select %p399, %s28, 1
          %s401 = smul.addr %s400, 4
          %s402 = smul.addr %s401, 8
          %s403 = scalar_lea.vmem %s5, %s402
        $region40: #{tpu_custom_call.1} parent=15 // pred_fallthru
          _
        // Predicated region
        $region41: #{tpu_custom_call.1} parent=15 // pred_check
          %p404 = pneg %p208
        $region42: #{tpu_custom_call.1} parent=15 // pred_check_branch
          %406 = sbr.rel (%p404) target = $region44
        $region43: #{tpu_custom_call.1} parent=15 // pred_region
          %p407 = scmp.lt.s32.totalorder %s28, 1
          %s408 = scalar_select %p407, %s28, 1
          %s409 = scalar_lea.vmem %s6, %s408
        $region44: #{tpu_custom_call.1} parent=15 // pred_fallthru
          _
        // Predicated region
        $region45: #{tpu_custom_call.1} parent=15 // pred_check
          %p410 = pneg %p234
        $region46: #{tpu_custom_call.1} parent=15 // pred_check_branch
          %412 = sbr.rel (%p410) target = $region48
        $region47: #{tpu_custom_call.1} parent=15 // pred_region
          %p413 = scmp.lt.s32.totalorder %s28, 1
          %s414 = scalar_select %p413, %s28, 1
          %s415 = smul.addr %s414, 8
          %s416 = smul.addr %s415, 8
          %s417 = scalar_lea.vmem %s7, %s416
        $region48: #{tpu_custom_call.1} parent=15 // pred_fallthru
          _
        // Predicated region
        $region49: #{tpu_custom_call.1} parent=15 // pred_check
          %p418 = pneg %p260
        $region50: #{tpu_custom_call.1} parent=15 // pred_check_branch
          %420 = sbr.rel (%p418) target = $region52
        $region51: #{tpu_custom_call.1} parent=15 // pred_region
          %p421 = scmp.lt.s32.totalorder %s28, 1
          %s422 = scalar_select %p421, %s28, 1
          %s423 = scalar_lea.vmem %s8, %s422
        $region52: #{tpu_custom_call.1} parent=15 // pred_fallthru
          _
        // Predicated region
        $region53: #{tpu_custom_call.1} parent=15 // pred_check
          %p424 = pneg %p286
        $region54: #{tpu_custom_call.1} parent=15 // pred_check_branch
          %426 = sbr.rel (%p424) target = $region56
        $region55: #{tpu_custom_call.1} parent=15 // pred_region
          %p427 = scmp.lt.s32.totalorder %s28, 1
          %s428 = scalar_select %p427, %s28, 1
          %s429 = scalar_lea.vmem %s9, %s428
        $region56: #{tpu_custom_call.1} parent=15 // pred_fallthru
          _
        // Predicated region
        $region57: #{tpu_custom_call.1} parent=15 // pred_check
          %p430 = pneg %p312
        $region58: #{tpu_custom_call.1} parent=15 // pred_check_branch
          %432 = sbr.rel (%p430) target = $region60
        $region59: #{tpu_custom_call.1} parent=15 // pred_region
          %p433 = scmp.lt.s32.totalorder %s28, 1
          %s434 = scalar_select %p433, %s28, 1
          %s435 = scalar_lea.vmem %s10, %s434
        $region60: #{tpu_custom_call.1} parent=15 // pred_fallthru
          _
      $region16: #{tpu_custom_call.1} parent=5 // pred_fallthru
        _
      %p436 = scmp.le.s32.totalorder 1, %s20
      %p437 = scmp.lt.s32.totalorder %s20, 5
      %p438 = pnand %p436, %p437
      %p439 = pneg %p438
      // Predicated region
      $region61: #{tpu_custom_call.1} parent=5 // pred_check
        _
      $region62: #{tpu_custom_call.1} parent=5 // pred_check_branch
        %441 = sbr.rel (%p438) target = $region64
      $region63: #{tpu_custom_call.1} parent=5 // pred_region
        %s442 = ssub.s32 %s20, 1
        %p443 = scmp.lt.s32.totalorder %s29, 1
        %s444 = scalar_select %p443, %s29, 1
        %s445 = smul.addr %s444, 8
        %s446 = scalar_lea.vmem %s0, %s445
        %p447 = pneg %p58
        %p448 = pneg %p55
        %p449 = scmp.lt.s32.totalorder %s30, 1
        %s450 = scalar_select %p449, %s30, 1
        %s451 = smul.addr %s450, 4
        %s452 = smul.addr %s451, 8
        %s453 = scalar_lea.vmem %s1, %s452
        %p454 = pneg %p84
        %p455 = pneg %p81
        %p456 = scmp.lt.s32.totalorder %s30, 1
        %s457 = scalar_select %p456, %s30, 1
        %s458 = scalar_lea.vmem %s2, %s457
        %p459 = pneg %p110
        %p460 = pneg %p107
        %p461 = scmp.lt.s32.totalorder %s30, 1
        %s462 = scalar_select %p461, %s30, 1
        %s463 = scalar_lea.vmem %s3, %s462
        %p464 = pneg %p136
        %p465 = pneg %p133
        %p466 = scmp.lt.s32.totalorder %s30, 1
        %s467 = scalar_select %p466, %s30, 1
        %s468 = scalar_lea.vmem %s4, %s467
        %p469 = pneg %p162
        %p470 = pneg %p159
        %p471 = scmp.lt.s32.totalorder %s30, 1
        %s472 = scalar_select %p471, %s30, 1
        %s473 = smul.addr %s472, 4
        %s474 = smul.addr %s473, 8
        %s475 = scalar_lea.vmem %s5, %s474
        %p476 = pneg %p188
        %p477 = pneg %p185
        %p478 = scmp.lt.s32.totalorder %s30, 1
        %s479 = scalar_select %p478, %s30, 1
        %s480 = scalar_lea.vmem %s6, %s479
        %p481 = pneg %p214
        %p482 = pneg %p211
        %p483 = scmp.lt.s32.totalorder %s30, 1
        %s484 = scalar_select %p483, %s30, 1
        %s485 = smul.addr %s484, 8
        %s486 = smul.addr %s485, 8
        %s487 = scalar_lea.vmem %s7, %s486
        %p488 = pneg %p240
        %p489 = pneg %p237
        %p490 = scmp.lt.s32.totalorder %s30, 1
        %s491 = scalar_select %p490, %s30, 1
        %s492 = scalar_lea.vmem %s8, %s491
        %p493 = pneg %p266
        %p494 = pneg %p263
        %p495 = scmp.lt.s32.totalorder %s30, 1
        %s496 = scalar_select %p495, %s30, 1
        %s497 = scalar_lea.vmem %s9, %s496
        %p498 = pneg %p292
        %p499 = pneg %p289
        %p500 = scmp.lt.s32.totalorder %s30, 1
        %s501 = scalar_select %p500, %s30, 1
        %s502 = scalar_lea.vmem %s10, %s501
        %p503 = pneg %p318
        %p504 = pneg %p315
        %p505 = pneg %p344
        %p506 = pneg %p341
        %s507 = sand.u32 %s331, 1
        %s508 = scalar_lea.sflag [#allocation5], %s507
        %s509 = sand.u32 %s331, 1
        %s510 = smul.addr %s509, 8
        %s511 = scalar_lea.vmem [#allocation4], %s510
        %p512 = scmp.lt.s32.totalorder %s29, 1
        %s513 = scalar_select %p512, %s29, 1
        %s514 = smul.addr %s513, 8
        %s515 = scalar_lea.vmem %s0, %s514
        %p516 = scmp.lt.s32.totalorder %s30, 1
        %s517 = scalar_select %p516, %s30, 1
        %s518 = smul.addr %s517, 4
        %s519 = smul.addr %s518, 8
        %s520 = scalar_lea.vmem %s1, %s519
        %p521 = scmp.lt.s32.totalorder %s30, 1
        %s522 = scalar_select %p521, %s30, 1
        %s523 = scalar_lea.vmem %s2, %s522
        %p524 = scmp.lt.s32.totalorder %s30, 1
        %s525 = scalar_select %p524, %s30, 1
        %s526 = scalar_lea.vmem %s3, %s525
        %p527 = scmp.lt.s32.totalorder %s30, 1
        %s528 = scalar_select %p527, %s30, 1
        %s529 = scalar_lea.vmem %s4, %s528
        %p530 = scmp.lt.s32.totalorder %s30, 1
        %s531 = scalar_select %p530, %s30, 1
        %s532 = smul.addr %s531, 4
        %s533 = smul.addr %s532, 8
        %s534 = scalar_lea.vmem %s5, %s533
        %p535 = scmp.lt.s32.totalorder %s30, 1
        %s536 = scalar_select %p535, %s30, 1
        %s537 = scalar_lea.vmem %s6, %s536
        %p538 = scmp.lt.s32.totalorder %s30, 1
        %s539 = scalar_select %p538, %s30, 1
        %s540 = smul.addr %s539, 8
        %s541 = smul.addr %s540, 8
        %s542 = scalar_lea.vmem %s7, %s541
        %p543 = scmp.lt.s32.totalorder %s30, 1
        %s544 = scalar_select %p543, %s30, 1
        %s545 = scalar_lea.vmem %s8, %s544
        %p546 = scmp.lt.s32.totalorder %s30, 1
        %s547 = scalar_select %p546, %s30, 1
        %s548 = scalar_lea.vmem %s9, %s547
        %p549 = scmp.lt.s32.totalorder %s30, 1
        %s550 = scalar_select %p549, %s30, 1
        %s551 = scalar_lea.vmem %s10, %s550
        %p552 = scmp.eq.s32.totalorder %s30, 0
        // Predicated region
        $region65: #{tpu_custom_call.1} parent=63 // pred_check
          %p553 = pneg %p552
        $region66: #{tpu_custom_call.1} parent=63 // pred_check_branch
          %555 = sbr.rel (%p553) target = $region68
        $region67: #{tpu_custom_call.1} parent=63 // pred_region
          %v556 = vld [vmem:[%s515] sm:$0xff]
          %vm557 = vcmask 261120
          %558 = vst.msk [vmem:[#allocation2] sm:$0xff] %vm557, %v556
        $region68: #{tpu_custom_call.1} parent=63 // pred_fallthru
          _
        %v559 = vld [vmem:[#allocation2] sm:$0xff]
        %v560 = vld [vmem:[%s520] sm:$0xff]
        %v561 = vld [vmem:[%s520 + $0x8] sm:$0xff]
        %v562 = vld [vmem:[%s520 + $0x10] sm:$0xff]
        %v563 = vld [vmem:[%s520 + $0x18] sm:$0xff]
        %v564 = vld [vmem:[%s523] sm:$0x1]
        %v566 = vperm.slane %v564, 0
        %vm568 = vcmask 261120
        %v570 = vsel %vm568, %v559, 0
        %572 = vmatpush.msra.mxu0 0.0
        %573 = vmatpush.msra.mxu0 0.0
        %574 = vmatpush.msra.mxu0 0.0
        %575 = vmatpush.msra.mxu0 0.0
        %576 = vmatpush.msra.mxu0 0.0
        %577 = vmatpush.msra.mxu0 0.0
        %578 = vmatpush.msra.mxu0 0.0
        %579 = vmatpush.msra.mxu0 0.0
        %580 = vmatpush.msra.mxu0 0.0
        %581 = vmatpush.msra.mxu0 0.0
        %582 = vmatpush.msra.mxu0 0.0
        %583 = vmatpush.msra.mxu0 0.0
        %584 = vmatpush.msra.mxu0 %v563
        %585 = vmatpush.msra.mxu0 %v562
        %586 = vmatpush.msra.mxu0 %v561
        %587 = vmatpush.msra.mxu0 %v560
        %588 = vmatmul.f32.gmra.mxu0 %v570
        %v589 = vpop.f32.mrf.mxu0
        %v590 = vadd.f32 %v566, %v589
        %591 = vdwg.mxu0
        %vm592 = vcmask 64512
        %v593 = vsel %vm592, %v590, -inf
        %594 = vmax.xlane.f32.xlu0 %v593
        %v595 = vpop.xlane.xlu0 %594
        %v596 = vsub.f32 %v590, %v595
        %v597 = vmul.f32 %v596, 1.442695
        %v598 = vpow.pop %v597
        %v599 = vsel %vm592, %v598, 0.0
        %600 = vadd.xlane.f32.xlu0 %v599
        %v601 = vpop.xlane.xlu0 %600
        %v602 = vrcp.pop %v601
        %v603 = vmul.f32 %v601, %v602
        %v604 = vsub.f32 1.0, %v603
        %v605 = vmul.f32 %v602, %v604
        %v606 = vadd.f32 %v602, %v605
        %vm607 = vweird.f32 %v601
        %vm608 = vweird.f32 %v602
        %vm609 = vmor %vm607, %vm608
        %v610 = vsel %vm609, %v602, %v606
        %v611 = vand.u32 2147483647, %v601
        %vm612 = vcmp.eq.f32.partialorder %v611, 8.507059e+37
        %v613 = vand.u32 %v601, 2147483648
        %v614 = vor.u32 1.1754944e-38, %v613
        %v615 = vsel %vm612, %v614, %v610
        %v616 = vmul.f32 %v598, %v615
        %v617 = vmul.f32 %v616, 0.35355338
        %vm618 = vcmask 589312
        %v619 = vsel %vm618, %v590, -inf
        %v620 = vrot.slane %v619, 4
        %v621 = vmax.f32 %v619, %v620
        %v622 = vrot.slane %v621, 2
        %v623 = vmax.f32 %v621, %v622
        %v624 = vrot.slane %v623, 1
        %v625 = vmax.f32 %v623, %v624
        %v626 = vsub.f32 %v590, %v625
        %v627 = vmul.f32 %v626, 1.442695
        %v628 = vpow.pop %v627
        %v629 = vsel %vm618, %v628, 0.0
        %v630 = vrot.slane %v629, 4
        %v631 = vadd.f32 %v629, %v630
        %v632 = vrot.slane %v631, 2
        %v633 = vadd.f32 %v631, %v632
        %v634 = vrot.slane %v633, 1
        %v635 = vadd.f32 %v633, %v634
        %v636 = vrcp.pop %v635
        %v637 = vmul.f32 %v635, %v636
        %v638 = vsub.f32 1.0, %v637
        %v639 = vmul.f32 %v636, %v638
        %v640 = vadd.f32 %v636, %v639
        %vm641 = vweird.f32 %v635
        %vm642 = vweird.f32 %v636
        %vm643 = vmor %vm641, %vm642
        %v644 = vsel %vm643, %v636, %v640
        %v645 = vand.u32 2147483647, %v635
        %vm646 = vcmp.eq.f32.partialorder %v645, 8.507059e+37
        %v647 = vand.u32 %v635, 2147483648
        %v648 = vor.u32 1.1754944e-38, %v647
        %v649 = vsel %vm646, %v648, %v644
        %v650 = vmul.f32 %v628, %v649
        %652 = vrot.lane.b32.xlu0 %v650, 64
        %v653 = vpop.permute.xlu0 %652
        %655 = vxpose.xlu0.b32.start [1/16] %v653, 128
        %656 = vxpose.xlu0.b32.cont [2/16] 0.0, 128
        %657 = vxpose.xlu0.b32.cont [3/16] 0.0, 128
        %658 = vxpose.xlu0.b32.cont [4/16] 0.0, 128
        %659 = vxpose.xlu0.b32.cont [5/16] 0.0, 128
        %660 = vxpose.xlu0.b32.cont [6/16] 0.0, 128
        %661 = vxpose.xlu0.b32.cont [7/16] 0.0, 128
        %662 = vxpose.xlu0.b32.cont [8/16] 0.0, 128
        %663 = vxpose.xlu0.b32.cont [9/16] 0.0, 128
        %664 = vxpose.xlu0.b32.cont [10/16] 0.0, 128
        %665 = vxpose.xlu0.b32.cont [11/16] 0.0, 128
        %666 = vxpose.xlu0.b32.cont [12/16] 0.0, 128
        %667 = vxpose.xlu0.b32.cont [13/16] 0.0, 128
        %668 = vxpose.xlu0.b32.cont [14/16] 0.0, 128
        %669 = vxpose.xlu0.b32.cont [15/16] 0.0, 128
        %670 = vxpose.xlu0.b32.end [16/16] 0.0, 128
        %v671 = vpop.trf.xlu0
        %v672 = vpop.trf.xlu0
        %v673 = vpop.trf.xlu0
        %v674 = vpop.trf.xlu0
        %v675 = vpop.trf.xlu0
        %v676 = vpop.trf.xlu0
        %v677 = vpop.trf.xlu0
        %v678 = vpop.trf.xlu0
        %v679 = vpop.trf.xlu0
        %v680 = vpop.trf.xlu0
        %v681 = vpop.trf.xlu0
        %v682 = vpop.trf.xlu0
        %v683 = vpop.trf.xlu0
        %v684 = vpop.trf.xlu0
        %v685 = vpop.trf.xlu0
        %v686 = vpop.trf.xlu0
        %688 = vrot.lane.b32.xlu0 %v590, 96
        %v689 = vpop.permute.xlu0 %688
        %v692 = vsel %vm592, %v671, 0
        %694 = vmatpush.msra.mxu0 0.0
        %695 = vmatpush.msra.mxu0 0.0
        %696 = vmatpush.msra.mxu0 0.0
        %697 = vmatpush.msra.mxu0 0.0
        %698 = vmatpush.msra.mxu0 0.0
        %699 = vmatpush.msra.mxu0 0.0
        %700 = vmatpush.msra.mxu0 0.0
        %701 = vmatpush.msra.mxu0 0.0
        %702 = vmatpush.msra.mxu0 0.0
        %703 = vmatpush.msra.mxu0 0.0
        %704 = vmatpush.msra.mxu0 0.0
        %705 = vmatpush.msra.mxu0 0.0
        %706 = vmatpush.msra.mxu0 0.0
        %707 = vmatpush.msra.mxu0 0.0
        %708 = vmatpush.msra.mxu0 0.0
        %709 = vmatpush.msra.mxu0 %v689
        %710 = vmatmul.f32.gmra.mxu0 %v692
        %v711 = vpop.f32.mrf.mxu0
        %v712 = vadd.f32 0.0, %v711
        %713 = vdwg.mxu0
        %v715 = vsel %vm592, %v617, 0
        %717 = vmatpush.msra.mxu0 0.0
        %718 = vmatpush.msra.mxu0 0.0
        %719 = vmatpush.msra.mxu0 0.0
        %720 = vmatpush.msra.mxu0 0.0
        %721 = vmatpush.msra.mxu0 0.0
        %722 = vmatpush.msra.mxu0 0.0
        %723 = vmatpush.msra.mxu0 0.0
        %724 = vmatpush.msra.mxu0 0.0
        %725 = vmatpush.msra.mxu0 0.0
        %726 = vmatpush.msra.mxu0 0.0
        %727 = vmatpush.msra.mxu0 0.0
        %728 = vmatpush.msra.mxu0 0.0
        %729 = vmatpush.msra.mxu0 0.0
        %730 = vmatpush.msra.mxu0 0.0
        %731 = vmatpush.msra.mxu0 0.0
        %732 = vmatpush.msra.mxu0 %v712
        %733 = vmatmul.f32.gmra.mxu0 %v715
        %v734 = vpop.f32.mrf.mxu0
        %v735 = vadd.f32 0.0, %v734
        %736 = vdwg.mxu0
        %737 = vst.msk [vmem:[#allocation3] sm:$0xff] %vm592, %v735
        %vm738 = vcmask 130112
        %v739 = vsel %vm738, %v590, -inf
        %740 = vmax.xlane.f32.xlu0 %v739
        %v741 = vpop.xlane.xlu0 %740
        %v742 = vsub.f32 %v590, %v741
        %v743 = vmul.f32 %v742, 1.442695
        %v744 = vpow.pop %v743
        %746 = vrot.lane.b32.xlu0 %v744, 120
        %v747 = vpop.permute.xlu0 %746
        %v749 = vsel %vm592, %v747, 0.0
        %750 = vadd.xlane.f32.xlu0 %v749
        %v751 = vpop.xlane.xlu0 %750
        %v752 = vrcp.pop %v751
        %v753 = vmul.f32 %v751, %v752
        %v754 = vsub.f32 1.0, %v753
        %v755 = vmul.f32 %v752, %v754
        %v756 = vadd.f32 %v752, %v755
        %vm757 = vweird.f32 %v751
        %vm758 = vweird.f32 %v752
        %vm759 = vmor %vm757, %vm758
        %v760 = vsel %vm759, %v752, %v756
        %v761 = vand.u32 2147483647, %v751
        %vm762 = vcmp.eq.f32.partialorder %v761, 8.507059e+37
        %v763 = vand.u32 %v751, 2147483648
        %v764 = vor.u32 1.1754944e-38, %v763
        %v765 = vsel %vm762, %v764, %v760
        %v766 = vmul.f32 %v744, %v765
        %v767 = vmul.f32 %v766, 0.35355338
        %vm768 = vcmask 654912
        %v769 = vsel %vm768, %v590, -inf
        %v770 = vrot.slane %v769, 4
        %v771 = vmax.f32 %v769, %v770
        %v772 = vrot.slane %v771, 2
        %v773 = vmax.f32 %v771, %v772
        %v774 = vrot.slane %v773, 1
        %v775 = vmax.f32 %v773, %v774
        %v776 = vsub.f32 %v590, %v775
        %v777 = vmul.f32 %v776, 1.442695
        %v778 = vpow.pop %v777
        %v779 = vsel %vm768, %v778, 0.0
        %v780 = vrot.slane %v779, 4
        %v781 = vadd.f32 %v779, %v780
        %v782 = vrot.slane %v781, 2
        %v783 = vadd.f32 %v781, %v782
        %v784 = vrot.slane %v783, 1
        %v785 = vadd.f32 %v783, %v784
        %v786 = vrcp.pop %v785
        %v787 = vmul.f32 %v785, %v786
        %v788 = vsub.f32 1.0, %v787
        %v789 = vmul.f32 %v786, %v788
        %v790 = vadd.f32 %v786, %v789
        %vm791 = vweird.f32 %v785
        %vm792 = vweird.f32 %v786
        %vm793 = vmor %vm791, %vm792
        %v794 = vsel %vm793, %v786, %v790
        %v795 = vand.u32 2147483647, %v785
        %vm796 = vcmp.eq.f32.partialorder %v795, 8.507059e+37
        %v797 = vand.u32 %v785, 2147483648
        %v798 = vor.u32 1.1754944e-38, %v797
        %v799 = vsel %vm796, %v798, %v794
        %v800 = vmul.f32 %v778, %v799
        %802 = vrot.lane.b32.xlu0 %v800, 56
        %v803 = vpop.permute.xlu0 %802
        %805 = vxpose.xlu0.b32.start [1/16] %v803, 128
        %806 = vxpose.xlu0.b32.cont [2/16] 0.0, 128
        %807 = vxpose.xlu0.b32.cont [3/16] 0.0, 128
        %808 = vxpose.xlu0.b32.cont [4/16] 0.0, 128
        %809 = vxpose.xlu0.b32.cont [5/16] 0.0, 128
        %810 = vxpose.xlu0.b32.cont [6/16] 0.0, 128
        %811 = vxpose.xlu0.b32.cont [7/16] 0.0, 128
        %812 = vxpose.xlu0.b32.cont [8/16] 0.0, 128
        %813 = vxpose.xlu0.b32.cont [9/16] 0.0, 128
        %814 = vxpose.xlu0.b32.cont [10/16] 0.0, 128
        %815 = vxpose.xlu0.b32.cont [11/16] 0.0, 128
        %816 = vxpose.xlu0.b32.cont [12/16] 0.0, 128
        %817 = vxpose.xlu0.b32.cont [13/16] 0.0, 128
        %818 = vxpose.xlu0.b32.cont [14/16] 0.0, 128
        %819 = vxpose.xlu0.b32.cont [15/16] 0.0, 128
        %820 = vxpose.xlu0.b32.end [16/16] 0.0, 128
        %v821 = vpop.trf.xlu0
        %v822 = vpop.trf.xlu0
        %v823 = vpop.trf.xlu0
        %v824 = vpop.trf.xlu0
        %v825 = vpop.trf.xlu0
        %v826 = vpop.trf.xlu0
        %v827 = vpop.trf.xlu0
        %v828 = vpop.trf.xlu0
        %v829 = vpop.trf.xlu0
        %v830 = vpop.trf.xlu0
        %v831 = vpop.trf.xlu0
        %v832 = vpop.trf.xlu0
        %v833 = vpop.trf.xlu0
        %v834 = vpop.trf.xlu0
        %v835 = vpop.trf.xlu0
        %v836 = vpop.trf.xlu0
        %837 = vrot.lane.b32.xlu0 %v590, 88
        %v838 = vpop.permute.xlu0 %837
        %v841 = vsel %vm592, %v821, 0
        %843 = vmatpush.msra.mxu0 0.0
        %844 = vmatpush.msra.mxu0 0.0
        %845 = vmatpush.msra.mxu0 0.0
        %846 = vmatpush.msra.mxu0 0.0
        %847 = vmatpush.msra.mxu0 0.0
        %848 = vmatpush.msra.mxu0 0.0
        %849 = vmatpush.msra.mxu0 0.0
        %850 = vmatpush.msra.mxu0 0.0
        %851 = vmatpush.msra.mxu0 0.0
        %852 = vmatpush.msra.mxu0 0.0
        %853 = vmatpush.msra.mxu0 0.0
        %854 = vmatpush.msra.mxu0 0.0
        %855 = vmatpush.msra.mxu0 0.0
        %856 = vmatpush.msra.mxu0 0.0
        %857 = vmatpush.msra.mxu0 0.0
        %858 = vmatpush.msra.mxu0 %v838
        %859 = vmatmul.f32.gmra.mxu0 %v841
        %v860 = vpop.f32.mrf.mxu0
        %v861 = vadd.f32 0.0, %v860
        %862 = vdwg.mxu0
        %864 = vrot.lane.b32.xlu0 %v767, 120
        %v865 = vpop.permute.xlu0 %864
        %v866 = vsel %vm592, %v865, 0
        %868 = vmatpush.msra.mxu0 0.0
        %869 = vmatpush.msra.mxu0 0.0
        %870 = vmatpush.msra.mxu0 0.0
        %871 = vmatpush.msra.mxu0 0.0
        %872 = vmatpush.msra.mxu0 0.0
        %873 = vmatpush.msra.mxu0 0.0
        %874 = vmatpush.msra.mxu0 0.0
        %875 = vmatpush.msra.mxu0 0.0
        %876 = vmatpush.msra.mxu0 0.0
        %877 = vmatpush.msra.mxu0 0.0
        %878 = vmatpush.msra.mxu0 0.0
        %879 = vmatpush.msra.mxu0 0.0
        %880 = vmatpush.msra.mxu0 0.0
        %881 = vmatpush.msra.mxu0 0.0
        %882 = vmatpush.msra.mxu0 0.0
        %883 = vmatpush.msra.mxu0 %v861
        %884 = vmatmul.f32.gmra.mxu0 %v866
        %v885 = vpop.f32.mrf.mxu0
        %v886 = vadd.f32 0.0, %v885
        %887 = vdwg.mxu0
        %889 = vrot.lane.b32.xlu0 %v886, 8
        %v890 = vpop.permute.xlu0 %889
        %892 = vst.msk [vmem:[#allocation3] sm:$0xff] %vm738, %v890
        %vm893 = vcmask 195712
        %v894 = vsel %vm893, %v590, -inf
        %895 = vmax.xlane.f32.xlu0 %v894
        %v896 = vpop.xlane.xlu0 %895
        %v897 = vsub.f32 %v590, %v896
        %v898 = vmul.f32 %v897, 1.442695
        %v899 = vpow.pop %v898
        %901 = vrot.lane.b32.xlu0 %v899, 112
        %v902 = vpop.permute.xlu0 %901
        %v904 = vsel %vm592, %v902, 0.0
        %905 = vadd.xlane.f32.xlu0 %v904
        %v906 = vpop.xlane.xlu0 %905
        %v907 = vrcp.pop %v906
        %v908 = vmul.f32 %v906, %v907
        %v909 = vsub.f32 1.0, %v908
        %v910 = vmul.f32 %v907, %v909
        %v911 = vadd.f32 %v907, %v910
        %vm912 = vweird.f32 %v906
        %vm913 = vweird.f32 %v907
        %vm914 = vmor %vm912, %vm913
        %v915 = vsel %vm914, %v907, %v911
        %v916 = vand.u32 2147483647, %v906
        %vm917 = vcmp.eq.f32.partialorder %v916, 8.507059e+37
        %v918 = vand.u32 %v906, 2147483648
        %v919 = vor.u32 1.1754944e-38, %v918
        %v920 = vsel %vm917, %v919, %v915
        %v921 = vmul.f32 %v899, %v920
        %v922 = vmul.f32 %v921, 0.35355338
        %vm923 = vcmask 720512
        %v924 = vsel %vm923, %v590, -inf
        %v925 = vrot.slane %v924, 4
        %v926 = vmax.f32 %v924, %v925
        %v927 = vrot.slane %v926, 2
        %v928 = vmax.f32 %v926, %v927
        %v929 = vrot.slane %v928, 1
        %v930 = vmax.f32 %v928, %v929
        %v931 = vsub.f32 %v590, %v930
        %v932 = vmul.f32 %v931, 1.442695
        %v933 = vpow.pop %v932
        %v934 = vsel %vm923, %v933, 0.0
        %v935 = vrot.slane %v934, 4
        %v936 = vadd.f32 %v934, %v935
        %v937 = vrot.slane %v936, 2
        %v938 = vadd.f32 %v936, %v937
        %v939 = vrot.slane %v938, 1
        %v940 = vadd.f32 %v938, %v939
        %v941 = vrcp.pop %v940
        %v942 = vmul.f32 %v940, %v941
        %v943 = vsub.f32 1.0, %v942
        %v944 = vmul.f32 %v941, %v943
        %v945 = vadd.f32 %v941, %v944
        %vm946 = vweird.f32 %v940
        %vm947 = vweird.f32 %v941
        %vm948 = vmor %vm946, %vm947
        %v949 = vsel %vm948, %v941, %v945
        %v950 = vand.u32 2147483647, %v940
        %vm951 = vcmp.eq.f32.partialorder %v950, 8.507059e+37
        %v952 = vand.u32 %v940, 2147483648
        %v953 = vor.u32 1.1754944e-38, %v952
        %v954 = vsel %vm951, %v953, %v949
        %v955 = vmul.f32 %v933, %v954
        %957 = vrot.lane.b32.xlu0 %v955, 48
        %v958 = vpop.permute.xlu0 %957
        %960 = vxpose.xlu0.b32.start [1/16] %v958, 128
        %961 = vxpose.xlu0.b32.cont [2/16] 0.0, 128
        %962 = vxpose.xlu0.b32.cont [3/16] 0.0, 128
        %963 = vxpose.xlu0.b32.cont [4/16] 0.0, 128
        %964 = vxpose.xlu0.b32.cont [5/16] 0.0, 128
        %965 = vxpose.xlu0.b32.cont [6/16] 0.0, 128
        %966 = vxpose.xlu0.b32.cont [7/16] 0.0, 128
        %967 = vxpose.xlu0.b32.cont [8/16] 0.0, 128
        %968 = vxpose.xlu0.b32.cont [9/16] 0.0, 128
        %969 = vxpose.xlu0.b32.cont [10/16] 0.0, 128
        %970 = vxpose.xlu0.b32.cont [11/16] 0.0, 128
        %971 = vxpose.xlu0.b32.cont [12/16] 0.0, 128
        %972 = vxpose.xlu0.b32.cont [13/16] 0.0, 128
        %973 = vxpose.xlu0.b32.cont [14/16] 0.0, 128
        %974 = vxpose.xlu0.b32.cont [15/16] 0.0, 128
        %975 = vxpose.xlu0.b32.end [16/16] 0.0, 128
        %v976 = vpop.trf.xlu0
        %v977 = vpop.trf.xlu0
        %v978 = vpop.trf.xlu0
        %v979 = vpop.trf.xlu0
        %v980 = vpop.trf.xlu0
        %v981 = vpop.trf.xlu0
        %v982 = vpop.trf.xlu0
        %v983 = vpop.trf.xlu0
        %v984 = vpop.trf.xlu0
        %v985 = vpop.trf.xlu0
        %v986 = vpop.trf.xlu0
        %v987 = vpop.trf.xlu0
        %v988 = vpop.trf.xlu0
        %v989 = vpop.trf.xlu0
        %v990 = vpop.trf.xlu0
        %v991 = vpop.trf.xlu0
        %992 = vrot.lane.b32.xlu0 %v590, 80
        %v993 = vpop.permute.xlu0 %992
        %v996 = vsel %vm592, %v976, 0
        %998 = vmatpush.msra.mxu0 0.0
        %999 = vmatpush.msra.mxu0 0.0
        %1000 = vmatpush.msra.mxu0 0.0
        %1001 = vmatpush.msra.mxu0 0.0
        %1002 = vmatpush.msra.mxu0 0.0
        %1003 = vmatpush.msra.mxu0 0.0
        %1004 = vmatpush.msra.mxu0 0.0
        %1005 = vmatpush.msra.mxu0 0.0
        %1006 = vmatpush.msra.mxu0 0.0
        %1007 = vmatpush.msra.mxu0 0.0
        %1008 = vmatpush.msra.mxu0 0.0
        %1009 = vmatpush.msra.mxu0 0.0
        %1010 = vmatpush.msra.mxu0 0.0
        %1011 = vmatpush.msra.mxu0 0.0
        %1012 = vmatpush.msra.mxu0 0.0
        %1013 = vmatpush.msra.mxu0 %v993
        %1014 = vmatmul.f32.gmra.mxu0 %v996
        %v1015 = vpop.f32.mrf.mxu0
        %v1016 = vadd.f32 0.0, %v1015
        %1017 = vdwg.mxu0
        %1019 = vrot.lane.b32.xlu0 %v922, 112
        %v1020 = vpop.permute.xlu0 %1019
        %v1021 = vsel %vm592, %v1020, 0
        %1023 = vmatpush.msra.mxu0 0.0
        %1024 = vmatpush.msra.mxu0 0.0
        %1025 = vmatpush.msra.mxu0 0.0
        %1026 = vmatpush.msra.mxu0 0.0
        %1027 = vmatpush.msra.mxu0 0.0
        %1028 = vmatpush.msra.mxu0 0.0
        %1029 = vmatpush.msra.mxu0 0.0
        %1030 = vmatpush.msra.mxu0 0.0
        %1031 = vmatpush.msra.mxu0 0.0
        %1032 = vmatpush.msra.mxu0 0.0
        %1033 = vmatpush.msra.mxu0 0.0
        %1034 = vmatpush.msra.mxu0 0.0
        %1035 = vmatpush.msra.mxu0 0.0
        %1036 = vmatpush.msra.mxu0 0.0
        %1037 = vmatpush.msra.mxu0 0.0
        %1038 = vmatpush.msra.mxu0 %v1016
        %1039 = vmatmul.f32.gmra.mxu0 %v1021
        %v1040 = vpop.f32.mrf.mxu0
        %v1041 = vadd.f32 0.0, %v1040
        %1042 = vdwg.mxu0
        %1044 = vrot.lane.b32.xlu0 %v1041, 16
        %v1045 = vpop.permute.xlu0 %1044
        %1047 = vst.msk [vmem:[#allocation3] sm:$0xff] %vm893, %v1045
        %vm1048 = vcmask 261312
        %v1049 = vsel %vm1048, %v590, -inf
        %1050 = vmax.xlane.f32.xlu0 %v1049
        %v1051 = vpop.xlane.xlu0 %1050
        %v1052 = vsub.f32 %v590, %v1051
        %v1053 = vmul.f32 %v1052, 1.442695
        %v1054 = vpow.pop %v1053
        %1056 = vrot.lane.b32.xlu0 %v1054, 104
        %v1057 = vpop.permute.xlu0 %1056
        %v1059 = vsel %vm592, %v1057, 0.0
        %1060 = vadd.xlane.f32.xlu0 %v1059
        %v1061 = vpop.xlane.xlu0 %1060
        %v1062 = vrcp.pop %v1061
        %v1063 = vmul.f32 %v1061, %v1062
        %v1064 = vsub.f32 1.0, %v1063
        %v1065 = vmul.f32 %v1062, %v1064
        %v1066 = vadd.f32 %v1062, %v1065
        %vm1067 = vweird.f32 %v1061
        %vm1068 = vweird.f32 %v1062
        %vm1069 = vmor %vm1067, %vm1068
        %v1070 = vsel %vm1069, %v1062, %v1066
        %v1071 = vand.u32 2147483647, %v1061
        %vm1072 = vcmp.eq.f32.partialorder %v1071, 8.507059e+37
        %v1073 = vand.u32 %v1061, 2147483648
        %v1074 = vor.u32 1.1754944e-38, %v1073
        %v1075 = vsel %vm1072, %v1074, %v1070
        %v1076 = vmul.f32 %v1054, %v1075
        %v1077 = vmul.f32 %v1076, 0.35355338
        %vm1078 = vcmask 786112
        %v1079 = vsel %vm1078, %v590, -inf
        %v1080 = vrot.slane %v1079, 4
        %v1081 = vmax.f32 %v1079, %v1080
        %v1082 = vrot.slane %v1081, 2
        %v1083 = vmax.f32 %v1081, %v1082
        %v1084 = vrot.slane %v1083, 1
        %v1085 = vmax.f32 %v1083, %v1084
        %v1086 = vsub.f32 %v590, %v1085
        %v1087 = vmul.f32 %v1086, 1.442695
        %v1088 = vpow.pop %v1087
        %v1089 = vsel %vm1078, %v1088, 0.0
        %v1090 = vrot.slane %v1089, 4
        %v1091 = vadd.f32 %v1089, %v1090
        %v1092 = vrot.slane %v1091, 2
        %v1093 = vadd.f32 %v1091, %v1092
        %v1094 = vrot.slane %v1093, 1
        %v1095 = vadd.f32 %v1093, %v1094
        %v1096 = vrcp.pop %v1095
        %v1097 = vmul.f32 %v1095, %v1096
        %v1098 = vsub.f32 1.0, %v1097
        %v1099 = vmul.f32 %v1096, %v1098
        %v1100 = vadd.f32 %v1096, %v1099
        %vm1101 = vweird.f32 %v1095
        %vm1102 = vweird.f32 %v1096
        %vm1103 = vmor %vm1101, %vm1102
        %v1104 = vsel %vm1103, %v1096, %v1100
        %v1105 = vand.u32 2147483647, %v1095
        %vm1106 = vcmp.eq.f32.partialorder %v1105, 8.507059e+37
        %v1107 = vand.u32 %v1095, 2147483648
        %v1108 = vor.u32 1.1754944e-38, %v1107
        %v1109 = vsel %vm1106, %v1108, %v1104
        %v1110 = vmul.f32 %v1088, %v1109
        %1112 = vrot.lane.b32.xlu0 %v1110, 40
        %v1113 = vpop.permute.xlu0 %1112
        %1115 = vxpose.xlu0.b32.start [1/16] %v1113, 128
        %1116 = vxpose.xlu0.b32.cont [2/16] 0.0, 128
        %1117 = vxpose.xlu0.b32.cont [3/16] 0.0, 128
        %1118 = vxpose.xlu0.b32.cont [4/16] 0.0, 128
        %1119 = vxpose.xlu0.b32.cont [5/16] 0.0, 128
        %1120 = vxpose.xlu0.b32.cont [6/16] 0.0, 128
        %1121 = vxpose.xlu0.b32.cont [7/16] 0.0, 128
        %1122 = vxpose.xlu0.b32.cont [8/16] 0.0, 128
        %1123 = vxpose.xlu0.b32.cont [9/16] 0.0, 128
        %1124 = vxpose.xlu0.b32.cont [10/16] 0.0, 128
        %1125 = vxpose.xlu0.b32.cont [11/16] 0.0, 128
        %1126 = vxpose.xlu0.b32.cont [12/16] 0.0, 128
        %1127 = vxpose.xlu0.b32.cont [13/16] 0.0, 128
        %1128 = vxpose.xlu0.b32.cont [14/16] 0.0, 128
        %1129 = vxpose.xlu0.b32.cont [15/16] 0.0, 128
        %1130 = vxpose.xlu0.b32.end [16/16] 0.0, 128
        %v1131 = vpop.trf.xlu0
        %v1132 = vpop.trf.xlu0
        %v1133 = vpop.trf.xlu0
        %v1134 = vpop.trf.xlu0
        %v1135 = vpop.trf.xlu0
        %v1136 = vpop.trf.xlu0
        %v1137 = vpop.trf.xlu0
        %v1138 = vpop.trf.xlu0
        %v1139 = vpop.trf.xlu0
        %v1140 = vpop.trf.xlu0
        %v1141 = vpop.trf.xlu0
        %v1142 = vpop.trf.xlu0
        %v1143 = vpop.trf.xlu0
        %v1144 = vpop.trf.xlu0
        %v1145 = vpop.trf.xlu0
        %v1146 = vpop.trf.xlu0
        %1147 = vrot.lane.b32.xlu0 %v590, 72
        %v1148 = vpop.permute.xlu0 %1147
        %v1151 = vsel %vm592, %v1131, 0
        %1153 = vmatpush.msra.mxu0 0.0
        %1154 = vmatpush.msra.mxu0 0.0
        %1155 = vmatpush.msra.mxu0 0.0
        %1156 = vmatpush.msra.mxu0 0.0
        %1157 = vmatpush.msra.mxu0 0.0
        %1158 = vmatpush.msra.mxu0 0.0
        %1159 = vmatpush.msra.mxu0 0.0
        %1160 = vmatpush.msra.mxu0 0.0
        %1161 = vmatpush.msra.mxu0 0.0
        %1162 = vmatpush.msra.mxu0 0.0
        %1163 = vmatpush.msra.mxu0 0.0
        %1164 = vmatpush.msra.mxu0 0.0
        %1165 = vmatpush.msra.mxu0 0.0
        %1166 = vmatpush.msra.mxu0 0.0
        %1167 = vmatpush.msra.mxu0 0.0
        %1168 = vmatpush.msra.mxu0 %v1148
        %1169 = vmatmul.f32.gmra.mxu0 %v1151
        %v1170 = vpop.f32.mrf.mxu0
        %v1171 = vadd.f32 0.0, %v1170
        %1172 = vdwg.mxu0
        %1174 = vrot.lane.b32.xlu0 %v1077, 104
        %v1175 = vpop.permute.xlu0 %1174
        %v1176 = vsel %vm592, %v1175, 0
        %1178 = vmatpush.msra.mxu0 0.0
        %1179 = vmatpush.msra.mxu0 0.0
        %1180 = vmatpush.msra.mxu0 0.0
        %1181 = vmatpush.msra.mxu0 0.0
        %1182 = vmatpush.msra.mxu0 0.0
        %1183 = vmatpush.msra.mxu0 0.0
        %1184 = vmatpush.msra.mxu0 0.0
        %1185 = vmatpush.msra.mxu0 0.0
        %1186 = vmatpush.msra.mxu0 0.0
        %1187 = vmatpush.msra.mxu0 0.0
        %1188 = vmatpush.msra.mxu0 0.0
        %1189 = vmatpush.msra.mxu0 0.0
        %1190 = vmatpush.msra.mxu0 0.0
        %1191 = vmatpush.msra.mxu0 0.0
        %1192 = vmatpush.msra.mxu0 0.0
        %1193 = vmatpush.msra.mxu0 %v1171
        %1194 = vmatmul.f32.gmra.mxu0 %v1176
        %v1195 = vpop.f32.mrf.mxu0
        %v1196 = vadd.f32 0.0, %v1195
        %1197 = vdwg.mxu0
        %1199 = vrot.lane.b32.xlu0 %v1196, 24
        %v1200 = vpop.permute.xlu0 %1199
        %1202 = vst.msk [vmem:[#allocation3] sm:$0xff] %vm1048, %v1200
        %v1203 = vld [vmem:[#allocation3] sm:$0xff]
        %v1204 = vadd.f32 %v1203, %v559
        %v1205 = vsel %vm568, %v1204, 0.0
        %1206 = vadd.xlane.f32.xlu0 %v1205
        %v1207 = vpop.xlane.xlu0 %1206
        %v1208 = vrcp.pop 32.0
        %v1209 = vmul.f32 32.0, %v1208
        %v1210 = vsub.f32 1.0, %v1209
        %v1211 = vmul.f32 %v1208, %v1210
        %v1212 = vadd.f32 %v1208, %v1211
        %vm1213 = vweird.f32 %v1208
        %v1214 = vsel %vm1213, %v1208, %v1212
        %v1215 = vmul.f32 %v1207, %v1214
        %v1216 = vsub.f32 %v1204, %v1215
        %v1217 = vmul.f32 %v1216, %v1216
        %v1218 = vsel %vm568, %v1217, 0.0
        %1219 = vadd.xlane.f32.xlu0 %v1218
        %v1220 = vpop.xlane.xlu0 %1219
        %v1221 = vmul.f32 %v1220, %v1214
        %v1222 = vadd.f32 %v1221, 1e-05
        %v1223 = vrsqrt.pop %v1222
        %v1224 = vmul.f32 %v1223, %v1222
        %v1225 = vmul.f32 %v1224, %v1223
        %v1226 = vmul.f32 0.5, %v1225
        %v1227 = vsub.f32 1.5, %v1226
        %v1228 = vmul.f32 %v1223, %v1227
        %vm1229 = vweird.f32 %v1222
        %vm1230 = vweird.f32 %v1223
        %vm1231 = vmor %vm1229, %vm1230
        %v1232 = vsel %vm1231, %v1223, %v1228
        %v1233 = vmul.f32 %v1216, %v1232
        %v1234 = vld [vmem:[%s526] sm:$0x1]
        %v1236 = vperm.slane %v1234, 0
        %v1238 = vmul.f32 %v1233, %v1236
        %v1239 = vld [vmem:[%s529] sm:$0x1]
        %v1241 = vperm.slane %v1239, 0
        %v1243 = vadd.f32 %v1238, %v1241
        %v1244 = vld [vmem:[%s534] sm:$0xff]
        %v1245 = vld [vmem:[%s534 + $0x8] sm:$0xff]
        %v1246 = vld [vmem:[%s534 + $0x10] sm:$0xff]
        %v1247 = vld [vmem:[%s534 + $0x18] sm:$0xff]
        %v1248 = vld [vmem:[%s537] sm:$0x1]
        %v1250 = vperm.slane %v1248, 0
        %v1253 = vsel %vm568, %v1243, 0
        %1255 = vmatpush.msra.mxu0 0.0
        %1256 = vmatpush.msra.mxu0 0.0
        %1257 = vmatpush.msra.mxu0 0.0
        %1258 = vmatpush.msra.mxu0 0.0
        %1259 = vmatpush.msra.mxu0 0.0
        %1260 = vmatpush.msra.mxu0 0.0
        %1261 = vmatpush.msra.mxu0 0.0
        %1262 = vmatpush.msra.mxu0 0.0
        %1263 = vmatpush.msra.mxu0 0.0
        %1264 = vmatpush.msra.mxu0 0.0
        %1265 = vmatpush.msra.mxu0 0.0
        %1266 = vmatpush.msra.mxu0 0.0
        %1267 = vmatpush.msra.mxu0 %v1247
        %1268 = vmatpush.msra.mxu0 %v1246
        %1269 = vmatpush.msra.mxu0 %v1245
        %1270 = vmatpush.msra.mxu0 %v1244
        %1271 = vmatmul.f32.gmra.mxu0 %v1253
        %v1272 = vpop.f32.mrf.mxu0
        %v1273 = vadd.f32 %v1250, %v1272
        %1274 = vdwg.mxu0
        %v1275 = vmax.f32 %v1273, 0.0
        %v1276 = vld [vmem:[%s542] sm:$0xff]
        %v1277 = vld [vmem:[%s542 + $0x8] sm:$0xff]
        %v1278 = vld [vmem:[%s542 + $0x10] sm:$0xff]
        %v1279 = vld [vmem:[%s542 + $0x18] sm:$0xff]
        %v1280 = vld [vmem:[%s542 + $0x20] sm:$0xff]
        %v1281 = vld [vmem:[%s542 + $0x28] sm:$0xff]
        %v1282 = vld [vmem:[%s542 + $0x30] sm:$0xff]
        %v1283 = vld [vmem:[%s542 + $0x38] sm:$0xff]
        %v1284 = vld [vmem:[%s545] sm:$0x1]
        %v1286 = vperm.slane %v1284, 0
        %vm1288 = vcmask 523264
        %v1290 = vsel %vm1288, %v1275, 0
        %1292 = vmatpush.msra.mxu0 0.0
        %1293 = vmatpush.msra.mxu0 0.0
        %1294 = vmatpush.msra.mxu0 0.0
        %1295 = vmatpush.msra.mxu0 0.0
        %1296 = vmatpush.msra.mxu0 0.0
        %1297 = vmatpush.msra.mxu0 0.0
        %1298 = vmatpush.msra.mxu0 0.0
        %1299 = vmatpush.msra.mxu0 0.0
        %1300 = vmatpush.msra.mxu0 %v1283
        %1301 = vmatpush.msra.mxu0 %v1282
        %1302 = vmatpush.msra.mxu0 %v1281
        %1303 = vmatpush.msra.mxu0 %v1280
        %1304 = vmatpush.msra.mxu0 %v1279
        %1305 = vmatpush.msra.mxu0 %v1278
        %1306 = vmatpush.msra.mxu0 %v1277
        %1307 = vmatpush.msra.mxu0 %v1276
        %1308 = vmatmul.f32.gmra.mxu0 %v1290
        %v1309 = vpop.f32.mrf.mxu0
        %v1310 = vadd.f32 %v1286, %v1309
        %1311 = vdwg.mxu0
        %v1312 = vadd.f32 %v1310, %v1243
        %v1313 = vsel %vm568, %v1312, 0.0
        %1314 = vadd.xlane.f32.xlu0 %v1313
        %v1315 = vpop.xlane.xlu0 %1314
        %v1316 = vmul.f32 %v1315, %v1214
        %v1317 = vsub.f32 %v1312, %v1316
        %v1318 = vmul.f32 %v1317, %v1317
        %v1319 = vsel %vm568, %v1318, 0.0
        %1320 = vadd.xlane.f32.xlu0 %v1319
        %v1321 = vpop.xlane.xlu0 %1320
        %v1322 = vmul.f32 %v1321, %v1214
        %v1323 = vadd.f32 %v1322, 1e-05
        %v1324 = vrsqrt.pop %v1323
        %v1325 = vmul.f32 %v1324, %v1323
        %v1326 = vmul.f32 %v1325, %v1324
        %v1327 = vmul.f32 0.5, %v1326
        %v1328 = vsub.f32 1.5, %v1327
        %v1329 = vmul.f32 %v1324, %v1328
        %vm1330 = vweird.f32 %v1323
        %vm1331 = vweird.f32 %v1324
        %vm1332 = vmor %vm1330, %vm1331
        %v1333 = vsel %vm1332, %v1324, %v1329
        %v1334 = vmul.f32 %v1317, %v1333
        %v1335 = vld [vmem:[%s548] sm:$0x1]
        %v1337 = vperm.slane %v1335, 0
        %v1339 = vmul.f32 %v1334, %v1337
        %v1340 = vld [vmem:[%s551] sm:$0x1]
        %v1342 = vperm.slane %v1340, 0
        %v1344 = vadd.f32 %v1339, %v1342
        %1345 = vst.msk [vmem:[#allocation2] sm:$0xff] %vm568, %v1344
        %p1346 = scmp.eq.s32.totalorder %s30, 1
        // Predicated region
        $region69: #{tpu_custom_call.1} parent=63 // pred_check
          %p1347 = pneg %p1346
        $region70: #{tpu_custom_call.1} parent=63 // pred_check_branch
          %1349 = sbr.rel (%p1347) target = $region72
        $region71: #{tpu_custom_call.1} parent=63 // pred_region
          %1350 = vst.msk [vmem:[%s511] sm:$0xff] %vm568, %v1344
        $region72: #{tpu_custom_call.1} parent=63 // pred_fallthru
          _
        %s1351 = sand.u32 %s331, 1
        %s1352 = scalar_lea.sflag [#allocation5], %s1351
        %s1353 = sand.u32 %s331, 1
        %s1354 = smul.addr %s1353, 8
        %s1355 = scalar_lea.vmem [#allocation4], %s1354
        // Predicated region
        $region73: #{tpu_custom_call.1} parent=63 // pred_check
          %p1356 = pneg %p341
        $region74: #{tpu_custom_call.1} parent=63 // pred_check_branch
          %1358 = sbr.rel (%p1356) target = $region76
        $region75: #{tpu_custom_call.1} parent=63 // pred_region
          %1360 = vsyncadd %s1352, 0
          %s1361 = smul.addr %s29, 8
          %s1362 = scalar_lea.hbm %s11, %s1361
          %s1364 = sshll.u32 %s1355, 4
          %s1365 = int_to_ptr.vmem [resolvable:$true] %s1364
          %s1366 = sshll.u32 %s1362, 4
          %s1367 = int_to_ptr.hbm [resolvable:$true] %s1366
          %1369 = dma.vmem_to_hbm [thread:$0]  %s1365, 128, %s1367, %s1352
        $region76: #{tpu_custom_call.1} parent=63 // pred_fallthru
          _
      $region64: #{tpu_custom_call.1} parent=5 // pred_fallthru
        _
      %p1370 = scmp.le.s32.totalorder 2, %s20
      // Predicated region
      $region77: #{tpu_custom_call.1} parent=5 // pred_check
        %p1371 = pneg %p1370
      $region78: #{tpu_custom_call.1} parent=5 // pred_check_branch
        %1373 = sbr.rel (%p1371) target = $region80
      $region79: #{tpu_custom_call.1} parent=5 // pred_region
        %s1374 = ssub.s32 %s20, 2
        // Predicated region
        $region81: #{tpu_custom_call.1} parent=79 // pred_check
          %p1375 = pneg %p347
        $region82: #{tpu_custom_call.1} parent=79 // pred_check_branch
          %1377 = sbr.rel (%p1375) target = $region84
        $region83: #{tpu_custom_call.1} parent=79 // pred_region
          %s1378 = sand.u32 %s332, 1
          %s1379 = scalar_lea.sflag [#allocation5], %s1378
          %s1380 = sand.u32 %s332, 1
          %s1381 = smul.addr %s1380, 8
          %s1382 = scalar_lea.vmem [#allocation4], %s1381
          %1384 = dma.done %s1379, 128
        $region84: #{tpu_custom_call.1} parent=79 // pred_fallthru
          _
      $region80: #{tpu_custom_call.1} parent=5 // pred_fallthru
        _
    $region6: #{tpu_custom_call.1} parent=1 // loop_footer
      %s24 = sadd.s32 1, %s20
    $region7: #{tpu_custom_call.1} parent=1 // loop_footer_branch
      %19 = sbr.rel target = $region3
    $region8: #{tpu_custom_call.1} parent=1 // loop_exit
      _
    %1385 = vsyncpa [#allocation5], 1
    %s1386 = scalar_lea.sflag [#allocation5], 1
    %1387 = vsyncpa %s1386, 1

</llo_original>
